<compile_context>
chip_gen: v7x
topology: tpu7x:2x2x1
jax: 0.10.0
libtpu: 0.0.40
codegen_flags: <defaults>
</compile_context>

<pallas_src>
import functools
import math

import jax
import jax.numpy as jnp
from jax.experimental import pallas as pl
from jax.experimental.pallas import tpu as pltpu

LN_EPS = 1e-12  # BERT LayerNorm eps


# ----------------------------- in-kernel helpers -----------------------------

def _layernorm(x, gamma, beta):
    # x is f32; statistics stay in f32.
    mu = jnp.mean(x, axis=-1, keepdims=True)
    var = jnp.mean(jnp.square(x - mu), axis=-1, keepdims=True)
    return (x - mu) * jax.lax.rsqrt(var + LN_EPS) * gamma + beta


def _gelu(x):
    c = math.sqrt(2.0 / math.pi)
    return 0.5 * x * (1.0 + jnp.tanh(c * (x + 0.044715 * x * x * x)))


# --------------------------------- kernel ------------------------------------

def encoder_stack_kernel(num_heads, head_dim,
                         emb_ref, embg_ref, embb_ref, bias_ref,
                         wqkv_ref, bqkv_ref, wo_ref, bo_ref,
                         ln1g_ref, ln1b_ref,
                         w1_ref, b1_ref, w2_ref, b2_ref,
                         ln2g_ref, ln2b_ref,
                         clsw_ref, clsb_ref,
                         probs_ref,
                         act_ref, ctx_ref):
    layer = pl.program_id(1)
    last = pl.num_programs(1) - 1

    # ---- layer 0: embedding LayerNorm into the resident f32 activation scratch ----
    @pl.when(layer == 0)
    def _():
        act_ref[...] = _layernorm(emb_ref[...].astype(jnp.float32),
                                  embg_ref[...], embb_ref[...])

    x = act_ref[...]                              # (Bt, S, H) f32, resident across layers
    B, S, H = x.shape
    x_bf = x.astype(jnp.bfloat16).reshape(B * S, H)

    # ---- fused QKV projection: one (H, 3H) bf16 matmul, f32 accumulation.
    # 1/sqrt(head_dim) is pre-folded into Wq/bq (no score scaling below).
    # Single f32->bf16 cast right after the bias add; qkv lives only as bf16.
    qkv = (jnp.dot(x_bf, wqkv_ref[0], preferred_element_type=jnp.float32)
           + bqkv_ref[0]).astype(jnp.bfloat16).reshape(B, S, 3 * H)

    mask_bias = bias_ref[...]                     # (Bt, 1, S) f32, precomputed once outside

    # ---- multi-head self-attention ----
    # Each head writes its context into the bf16 ctx slab; Wo is applied once afterwards.
    for h in range(num_heads):
        lo, hi = h * head_dim, (h + 1) * head_dim
        qh = qkv[:, :, lo:hi]                     # bf16 slices, no per-head re-cast
        kh = qkv[:, :, H + lo:H + hi]
        vh = qkv[:, :, 2 * H + lo:2 * H + hi]
        s = jnp.einsum('bqd,bkd->bqk', qh, kh,
                       preferred_element_type=jnp.float32)     # scale already folded in
        s = s + mask_bias                                      # broadcast over queries
        s = s - jnp.max(s, axis=-1, keepdims=True)             # f32 softmax stats
        p = jnp.exp(s)
        p = p * pl.reciprocal(jnp.sum(p, axis=-1, keepdims=True), approx=True)
        ctx_ref[:, :, lo:hi] = jnp.einsum(
            'bqk,bkd->bqd', p.astype(jnp.bfloat16), vh,
            preferred_element_type=jnp.float32).astype(jnp.bfloat16)

    # ---- single full-width output projection (K = H) + bias ----
    attn = (jnp.dot(ctx_ref[...].reshape(B * S, H), wo_ref[0],
                    preferred_element_type=jnp.float32) + bo_ref[0])

    h1 = _layernorm(x + attn.reshape(B, S, H), ln1g_ref[0], ln1b_ref[0])

    # ---- feed-forward (GELU in f32, bf16 matmul inputs, f32 accumulation) ----
    ff = _gelu(jnp.dot(h1.astype(jnp.bfloat16).reshape(B * S, H), w1_ref[0],
                       preferred_element_type=jnp.float32) + b1_ref[0])
    ff_out = (jnp.dot(ff.astype(jnp.bfloat16), w2_ref[0],
                      preferred_element_type=jnp.float32) + b2_ref[0]).reshape(B, S, H)
    y = _layernorm(h1 + ff_out, ln2g_ref[0], ln2b_ref[0])

    # keep the activation resident for the next layer; skip the store on the last layer
    @pl.when(layer < last)
    def _():
        act_ref[...] = y

    # ---- last layer: fused CLS pick + classifier + sigmoid, lane-dense (Bt,128) output ----
    @pl.when(layer == last)
    def _():
        cls = y[:, 0, :]                          # (Bt, H)
        logits = (jnp.dot(cls.astype(jnp.bfloat16), clsw_ref[...],
                          preferred_element_type=jnp.float32) + clsb_ref[...])
        probs_ref[...] = 1.0 / (1.0 + jnp.exp(-logits))


# ------------------------------ params & model -------------------------------

def init_params(key, *, vocab_size, hidden, num_heads, num_layers, intermediate,
                max_pos, type_vocab=2):
    L, H, I = num_layers, hidden, intermediate
    head_dim = H // num_heads
    k = jax.random.split(key, 8)
    n = lambda kk, shape: 0.02 * jax.random.normal(kk, shape, jnp.float32)
    zeros = lambda shape: jnp.zeros(shape, jnp.float32)
    ones = lambda shape: jnp.ones(shape, jnp.float32)

    # fold the attention scale 1/sqrt(head_dim) into the Q projection (weights + bias);
    # the kernel never multiplies the score tensor.
    scale = 1.0 / math.sqrt(head_dim)
    wqkv = n(k[3], (L, H, 3 * H)).at[:, :, :H].multiply(scale)
    bqkv = zeros((L, 1, 3 * H)).at[:, :, :H].multiply(scale)

    params = {
        # embedding tables in bf16 (halves gather + DMA traffic)
        'word_emb': n(k[0], (vocab_size, H)).astype(jnp.bfloat16),
        'pos_emb':  n(k[1], (max_pos, H)).astype(jnp.bfloat16),
        'type_emb': n(k[2], (type_vocab, H)).astype(jnp.bfloat16),
        'emb_ln_g': ones((1, H)),
        'emb_ln_b': zeros((1, H)),
        # per-layer weights stacked along a leading layer axis so a single pallas_call
        # streams them layer-by-layer (double-buffered by BlockSpec).  Matmul weights bf16.
        'wqkv': wqkv.astype(jnp.bfloat16),
        'bqkv': bqkv,
        'wo':   n(k[4], (L, H, H)).astype(jnp.bfloat16),
        'bo':   zeros((L, 1, H)),
        'ln1_g': ones((L, 1, H)), 'ln1_b': zeros((L, 1, H)),
        'w1':   n(k[5], (L, H, I)).astype(jnp.bfloat16),
        'b1':   zeros((L, 1, I)),
        'w2':   n(k[6], (L, I, H)).astype(jnp.bfloat16),
        'b2':   zeros((L, 1, H)),
        'ln2_g': ones((L, 1, H)), 'ln2_b': zeros((L, 1, H)),
        # classifier: (H, 1) padded to a lane-dense (H, 128); column 0 is the real weight.
        'cls_w': jnp.zeros((H, 128), jnp.float32).at[:, 0].set(
            n(k[7], (H,))).astype(jnp.bfloat16),
        'cls_b': zeros((1, 128)),
    }
    return params


def discriminator_forward(params, input_ids, attention_mask, *, num_heads,
                          batch_tile=None, vmem_limit_bytes=48 * 1024 * 1024):
    B, S = input_ids.shape
    L, H = params['wo'].shape[0], params['wo'].shape[1]
    I = params['w1'].shape[2]
    head_dim = H // num_heads

    # batch tiling: at production shapes pick batch_tile (a multiple of 8 dividing B) so
    # the leading "parallel" grid axis shards batch tiles across v7x's two TensorCores.
    bt = B if batch_tile is None else batch_tile
    assert B % bt == 0
    n_bt = B // bt

    # --- embedding gathers (JAX glue), summed in f32 then cast once to bf16 ---
    emb = (params['word_emb'][input_ids].astype(jnp.float32)
           + params['pos_emb'][:S][None, :, :].astype(jnp.float32)
           + params['type_emb'][0][None, None, :].astype(jnp.float32)
           ).astype(jnp.bfloat16)
    # additive attention-mask bias, computed once: (B, 1, S) f32
    mask_bias = ((1.0 - attention_mask.astype(jnp.float32)) * -10000.0)[:, None, :]

    kern = functools.partial(encoder_stack_kernel, num_heads, head_dim)

    batch3 = lambda shape: pl.BlockSpec(shape, lambda b, l: (b, 0, 0))
    const2 = lambda shape: pl.BlockSpec(shape, lambda b, l: (0, 0))
    perlayer = lambda d1, d2: pl.BlockSpec((1, d1, d2), lambda b, l: (l, 0, 0))

    grid_spec = pltpu.PrefetchScalarGridSpec(
        num_scalar_prefetch=0,
        grid=(n_bt, L),                    # (batch tiles: parallel, layers: sequential)
        in_specs=[
            batch3((bt, S, H)),    # emb (bf16)
            const2((1, H)),        # emb_ln_g
            const2((1, H)),        # emb_ln_b
            batch3((bt, 1, S)),    # mask bias (f32)
            perlayer(H, 3 * H),    # wqkv (bf16, Q-scaled)
            perlayer(1, 3 * H),    # bqkv
            perlayer(H, H),        # wo (bf16)
            perlayer(1, H),        # bo
            perlayer(1, H),        # ln1_g
            perlayer(1, H),        # ln1_b
            perlayer(H, I),        # w1 (bf16)
            perlayer(1, I),        # b1
            perlayer(I, H),        # w2 (bf16)
            perlayer(1, H),        # b2
            perlayer(1, H),        # ln2_g
            perlayer(1, H),        # ln2_b
            const2((H, 128)),      # cls_w (lane-padded, bf16)
            const2((1, 128)),      # cls_b
        ],
        out_specs=pl.BlockSpec((bt, 128), lambda b, l: (b, 0)),   # written at last layer
        scratch_shapes=[
            pltpu.VMEM((bt, S, H), jnp.float32),    # resident activation
            pltpu.VMEM((bt, S, H), jnp.bfloat16),   # per-layer head-context slab
        ],
    )

    probs_pad = pl.pallas_call(
        kern,
        grid_spec=grid_spec,
        out_shape=jax.ShapeDtypeStruct((B, 128), jnp.float32),
        compiler_params=pltpu.CompilerParams(
            # batch tiles independent (megacore-shardable); layers strictly sequential.
            dimension_semantics=("parallel", "arbitrary"),
            # 48 MiB is safe on every generation (incl. v7x 64 MiB physical);
            # pass ~100 MiB on v5e/v6e (128 MiB physical) at production shapes.
            vmem_limit_bytes=vmem_limit_bytes,
        ),
    )(emb, params['emb_ln_g'], params['emb_ln_b'], mask_bias,
      params['wqkv'], params['bqkv'], params['wo'], params['bo'],
      params['ln1_g'], params['ln1_b'],
      params['w1'], params['b1'], params['w2'], params['b2'],
      params['ln2_g'], params['ln2_b'],
      params['cls_w'], params['cls_b'])

    return probs_pad[:, :1]                        # (B, 1) probabilities


# ----------------------------------- main -------------------------------------

if __name__ == "__main__":
    B, S = 2, 8
    HIDDEN, HEADS, LAYERS, INTER = 32, 2, 2, 64
    VOCAB, MAX_POS = 100, 16

    key = jax.random.PRNGKey(0)
    k_params, k_ids = jax.random.split(key)
    params = init_params(k_params, vocab_size=VOCAB, hidden=HIDDEN, num_heads=HEADS,
                         num_layers=LAYERS, intermediate=INTER, max_pos=MAX_POS)

    input_ids = jax.random.randint(k_ids, (B, S), 0, VOCAB, dtype=jnp.int32)
    attention_mask = jnp.ones((B, S), jnp.int32).at[1, 6:].set(0)  # pad tail of sample 1

    fwd = jax.jit(functools.partial(discriminator_forward, num_heads=HEADS))
    out = jax.block_until_ready(fwd(params, input_ids, attention_mask))

    assert out.shape == (B, 1) and out.dtype == jnp.float32
    assert bool(jnp.all((out >= 0.0) & (out <= 1.0)))
    print("KERNEL_OK")
</pallas_src>

<mosaic_0001>
module attributes {stable_mosaic.version = 11 : i64} {
  func.func @encoder_stack_kernel(%arg0: i32, %arg1: i32, %arg2: memref<2x8x32xbf16, #tpu.memory_space<vmem>>, %arg3: memref<1x32xf32, #tpu.memory_space<vmem>>, %arg4: memref<1x32xf32, #tpu.memory_space<vmem>>, %arg5: memref<2x1x8xf32, #tpu.memory_space<vmem>>, %arg6: memref<1x32x96xbf16, #tpu.memory_space<vmem>>, %arg7: memref<1x1x96xf32, #tpu.memory_space<vmem>>, %arg8: memref<1x32x32xbf16, #tpu.memory_space<vmem>>, %arg9: memref<1x1x32xf32, #tpu.memory_space<vmem>>, %arg10: memref<1x1x32xf32, #tpu.memory_space<vmem>>, %arg11: memref<1x1x32xf32, #tpu.memory_space<vmem>>, %arg12: memref<1x32x64xbf16, #tpu.memory_space<vmem>>, %arg13: memref<1x1x64xf32, #tpu.memory_space<vmem>>, %arg14: memref<1x64x32xbf16, #tpu.memory_space<vmem>>, %arg15: memref<1x1x32xf32, #tpu.memory_space<vmem>>, %arg16: memref<1x1x32xf32, #tpu.memory_space<vmem>>, %arg17: memref<1x1x32xf32, #tpu.memory_space<vmem>>, %arg18: memref<32x128xbf16, #tpu.memory_space<vmem>>, %arg19: memref<1x128xf32, #tpu.memory_space<vmem>>, %arg20: memref<2x128xf32, #tpu.memory_space<vmem>>, %arg21: memref<2x8x32xf32, #tpu.memory_space<vmem>>, %arg22: memref<2x8x32xbf16, #tpu.memory_space<vmem>>) attributes {dimension_semantics = [#tpu.dimension_semantics<parallel>, #tpu.dimension_semantics<arbitrary>], iteration_bounds = array<i64: 1, 2>, scalar_prefetch = 0 : i64, scratch_operands = 2 : i64, tpu.core_type = #tpu.core_type<tc>, window_params = [{transform_indices = @transform_0, window_bounds = array<i64: 2, 8, 32>}, {pipeline_mode = #tpu.pipeline_mode<synchronous>, transform_indices = @transform_1, window_bounds = array<i64: 1, 32>}, {pipeline_mode = #tpu.pipeline_mode<synchronous>, transform_indices = @transform_2, window_bounds = array<i64: 1, 32>}, {transform_indices = @transform_3, window_bounds = array<i64: 2, 1, 8>}, {transform_indices = @transform_4, window_bounds = array<i64: 1, 32, 96>}, {transform_indices = @transform_5, window_bounds = array<i64: 1, 1, 96>}, {transform_indices = @transform_6, window_bounds = array<i64: 1, 32, 32>}, {transform_indices = @transform_7, window_bounds = array<i64: 1, 1, 32>}, {transform_indices = @transform_8, window_bounds = array<i64: 1, 1, 32>}, {transform_indices = @transform_9, window_bounds = array<i64: 1, 1, 32>}, {transform_indices = @transform_10, window_bounds = array<i64: 1, 32, 64>}, {transform_indices = @transform_11, window_bounds = array<i64: 1, 1, 64>}, {transform_indices = @transform_12, window_bounds = array<i64: 1, 64, 32>}, {transform_indices = @transform_13, window_bounds = array<i64: 1, 1, 32>}, {transform_indices = @transform_14, window_bounds = array<i64: 1, 1, 32>}, {transform_indices = @transform_15, window_bounds = array<i64: 1, 1, 32>}, {pipeline_mode = #tpu.pipeline_mode<synchronous>, transform_indices = @transform_16, window_bounds = array<i64: 32, 128>}, {pipeline_mode = #tpu.pipeline_mode<synchronous>, transform_indices = @transform_17, window_bounds = array<i64: 1, 128>}, {transform_indices = @transform_18, window_bounds = array<i64: 2, 128>}]} {
    %c0_i32 = arith.constant 0 : i32
    %0 = arith.cmpi eq, %arg1, %c0_i32 : i32
    %1 = arith.extui %0 : i1 to i32
    %c0_i32_0 = arith.constant 0 : i32
    %2 = arith.cmpi ne, %1, %c0_i32_0 : i32
    scf.if %2 {
      %c0_78 = arith.constant 0 : index
      %c0_79 = arith.constant 0 : index
      %c0_80 = arith.constant 0 : index
      %161 = vector.load %arg2[%c0_78, %c0_79, %c0_80] : memref<2x8x32xbf16, #tpu.memory_space<vmem>>, vector<2x8x32xbf16>
      %162 = arith.extf %161 : vector<2x8x32xbf16> to vector<2x8x32xf32>
      %c0_81 = arith.constant 0 : index
      %c0_82 = arith.constant 0 : index
      %163 = vector.load %arg3[%c0_81, %c0_82] : memref<1x32xf32, #tpu.memory_space<vmem>>, vector<1x32xf32>
      %c0_83 = arith.constant 0 : index
      %c0_84 = arith.constant 0 : index
      %164 = vector.load %arg4[%c0_83, %c0_84] : memref<1x32xf32, #tpu.memory_space<vmem>>, vector<1x32xf32>
      %cst_85 = arith.constant dense<0.000000e+00> : vector<2x8xf32>
      %165 = vector.multi_reduction <add>, %162, %cst_85 [2] : vector<2x8x32xf32> to vector<2x8xf32>
      %166 = vector.shape_cast %165 : vector<2x8xf32> to vector<2x8x1xf32>
      %cst_86 = arith.constant 3.200000e+01 : f32
      %167 = vector.broadcast %cst_86 : f32 to vector<2x8x1xf32>
      %168 = arith.divf %166, %167 : vector<2x8x1xf32>
      %169 = vector.broadcast %168 : vector<2x8x1xf32> to vector<2x8x32xf32>
      %170 = arith.subf %162, %169 : vector<2x8x32xf32>
      %171 = arith.mulf %170, %170 : vector<2x8x32xf32>
      %cst_87 = arith.constant dense<0.000000e+00> : vector<2x8xf32>
      %172 = vector.multi_reduction <add>, %171, %cst_87 [2] : vector<2x8x32xf32> to vector<2x8xf32>
      %173 = vector.shape_cast %172 : vector<2x8xf32> to vector<2x8x1xf32>
      %cst_88 = arith.constant 3.200000e+01 : f32
      %174 = vector.broadcast %cst_88 : f32 to vector<2x8x1xf32>
      %175 = arith.divf %173, %174 : vector<2x8x1xf32>
      %176 = vector.broadcast %168 : vector<2x8x1xf32> to vector<2x8x32xf32>
      %177 = arith.subf %162, %176 : vector<2x8x32xf32>
      %cst_89 = arith.constant 9.99999996E-13 : f32
      %178 = vector.broadcast %cst_89 : f32 to vector<2x8x1xf32>
      %179 = arith.addf %175, %178 : vector<2x8x1xf32>
      %180 = math.rsqrt %179 : vector<2x8x1xf32>
      %181 = vector.broadcast %180 : vector<2x8x1xf32> to vector<2x8x32xf32>
      %182 = arith.mulf %177, %181 : vector<2x8x32xf32>
      %183 = vector.shape_cast %163 : vector<1x32xf32> to vector<1x1x32xf32>
      %184 = vector.broadcast %183 : vector<1x1x32xf32> to vector<2x8x32xf32>
      %185 = arith.mulf %182, %184 : vector<2x8x32xf32>
      %186 = vector.shape_cast %164 : vector<1x32xf32> to vector<1x1x32xf32>
      %187 = vector.broadcast %186 : vector<1x1x32xf32> to vector<2x8x32xf32>
      %188 = arith.addf %185, %187 : vector<2x8x32xf32>
      %c0_90 = arith.constant 0 : index
      %c0_91 = arith.constant 0 : index
      %c0_92 = arith.constant 0 : index
      %189 = vector.load %arg21[%c0_90, %c0_91, %c0_92] : memref<2x8x32xf32, #tpu.memory_space<vmem>>, vector<2x8x32xf32>
      tpu.vector_store %arg21[%c0_90, %c0_91, %c0_92], %188 {strides = array<i32>} : memref<2x8x32xf32, #tpu.memory_space<vmem>>, vector<2x8x32xf32>,
    } else {
    }
    %c0 = arith.constant 0 : index
    %c0_1 = arith.constant 0 : index
    %c0_2 = arith.constant 0 : index
    %3 = vector.load %arg21[%c0, %c0_1, %c0_2] : memref<2x8x32xf32, #tpu.memory_space<vmem>>, vector<2x8x32xf32>
    %4 = arith.truncf %3 : vector<2x8x32xf32> to vector<2x8x32xbf16>
    %5 = vector.shape_cast %4 : vector<2x8x32xbf16> to vector<16x32xbf16>
    %c0_3 = arith.constant 0 : index
    %c0_4 = arith.constant 0 : index
    %c0_5 = arith.constant 0 : index
    %6 = vector.load %arg6[%c0_3, %c0_4, %c0_5] : memref<1x32x96xbf16, #tpu.memory_space<vmem>>, vector<1x32x96xbf16>
    %7 = vector.shape_cast %6 : vector<1x32x96xbf16> to vector<32x96xbf16>
    %cst = arith.constant dense<0.000000e+00> : vector<16x96xf32>
    %8 = tpu.matmul %5, %7, %cst {dimension_numbers = #tpu.dot_dimension_numbers<[1], [0], [0], [1], [0, 0, 1, 1], [], []>} : vector<16x32xbf16>, vector<32x96xbf16>, vector<16x96xf32> -> vector<16x96xf32>
    %c0_6 = arith.constant 0 : index
    %c0_7 = arith.constant 0 : index
    %c0_8 = arith.constant 0 : index
    %9 = vector.load %arg7[%c0_6, %c0_7, %c0_8] : memref<1x1x96xf32, #tpu.memory_space<vmem>>, vector<1x1x96xf32>
    %10 = vector.shape_cast %9 : vector<1x1x96xf32> to vector<1x96xf32>
    %11 = vector.broadcast %10 : vector<1x96xf32> to vector<16x96xf32>
    %12 = arith.addf %8, %11 : vector<16x96xf32>
    %13 = arith.truncf %12 : vector<16x96xf32> to vector<16x96xbf16>
    %14 = vector.shape_cast %13 : vector<16x96xbf16> to vector<2x8x96xbf16>
    %c0_9 = arith.constant 0 : index
    %c0_10 = arith.constant 0 : index
    %c0_11 = arith.constant 0 : index
    %15 = vector.load %arg5[%c0_9, %c0_10, %c0_11] : memref<2x1x8xf32, #tpu.memory_space<vmem>>, vector<2x1x8xf32>
    %16 = vector.extract_strided_slice %14 {offsets = [0, 0, 0], sizes = [2, 8, 16], strides = [1, 1, 1]} : vector<2x8x96xbf16> to vector<2x8x16xbf16>
    %17 = vector.extract_strided_slice %14 {offsets = [0, 0, 32], sizes = [2, 8, 16], strides = [1, 1, 1]} : vector<2x8x96xbf16> to vector<2x8x16xbf16>
    %18 = vector.extract_strided_slice %14 {offsets = [0, 0, 64], sizes = [2, 8, 16], strides = [1, 1, 1]} : vector<2x8x96xbf16> to vector<2x8x16xbf16>
    "tpu.trace_start"() <{level = 10 : i32, message = "bqd,bkd->bqk"}> : () -> ()
    %cst_12 = arith.constant dense<0.000000e+00> : vector<2x8x8xf32>
    %19 = tpu.matmul %16, %17, %cst_12 {dimension_numbers = #tpu.dot_dimension_numbers<[2], [2], [1], [1], [0, 0, 0, 1, 1, 1], [0], [0]>} : vector<2x8x16xbf16>, vector<2x8x16xbf16>, vector<2x8x8xf32> -> vector<2x8x8xf32>
    "tpu.trace_stop"() : () -> ()
    %20 = vector.broadcast %15 : vector<2x1x8xf32> to vector<2x8x8xf32>
    %21 = arith.addf %19, %20 : vector<2x8x8xf32>
    %cst_13 = arith.constant dense<0xFF800000> : vector<2x8xf32>
    %22 = vector.multi_reduction <maximumf>, %21, %cst_13 [2] : vector<2x8x8xf32> to vector<2x8xf32>
    %23 = vector.shape_cast %22 : vector<2x8xf32> to vector<2x8x1xf32>
    %24 = vector.broadcast %23 : vector<2x8x1xf32> to vector<2x8x8xf32>
    %25 = arith.subf %21, %24 : vector<2x8x8xf32>
    %26 = math.exp %25 : vector<2x8x8xf32>
    %cst_14 = arith.constant dense<0.000000e+00> : vector<2x8xf32>
    %27 = vector.multi_reduction <add>, %26, %cst_14 [2] : vector<2x8x8xf32> to vector<2x8xf32>
    %28 = vector.shape_cast %27 : vector<2x8xf32> to vector<2x8x1xf32>
    %29 = tpu.reciprocal %28 {approx = true} : vector<2x8x1xf32> -> vector<2x8x1xf32>
    %30 = vector.broadcast %29 : vector<2x8x1xf32> to vector<2x8x8xf32>
    %31 = arith.mulf %26, %30 : vector<2x8x8xf32>
    %32 = arith.truncf %31 : vector<2x8x8xf32> to vector<2x8x8xbf16>
    "tpu.trace_start"() <{level = 10 : i32, message = "bqk,bkd->bqd"}> : () -> ()
    %cst_15 = arith.constant dense<0.000000e+00> : vector<2x8x16xf32>
    %33 = tpu.matmul %32, %18, %cst_15 {dimension_numbers = #tpu.dot_dimension_numbers<[2], [1], [1], [2], [0, 0, 0, 1, 1, 2], [0], [0]>} : vector<2x8x8xbf16>, vector<2x8x16xbf16>, vector<2x8x16xf32> -> vector<2x8x16xf32>
    "tpu.trace_stop"() : () -> ()
    %34 = arith.truncf %33 : vector<2x8x16xf32> to vector<2x8x16xbf16>
    %c0_16 = arith.constant 0 : index
    %c0_17 = arith.constant 0 : index
    %c0_18 = arith.constant 0 : index
    %35 = vector.load %arg22[%c0_16, %c0_17, %c0_18] : memref<2x8x32xbf16, #tpu.memory_space<vmem>>, vector<2x8x16xbf16>
    tpu.vector_store %arg22[%c0_16, %c0_17, %c0_18], %34 {strides = array<i32>} : memref<2x8x32xbf16, #tpu.memory_space<vmem>>, vector<2x8x16xbf16>,
    %36 = vector.extract_strided_slice %14 {offsets = [0, 0, 16], sizes = [2, 8, 16], strides = [1, 1, 1]} : vector<2x8x96xbf16> to vector<2x8x16xbf16>
    %37 = vector.extract_strided_slice %14 {offsets = [0, 0, 48], sizes = [2, 8, 16], strides = [1, 1, 1]} : vector<2x8x96xbf16> to vector<2x8x16xbf16>
    %38 = vector.extract_strided_slice %14 {offsets = [0, 0, 80], sizes = [2, 8, 16], strides = [1, 1, 1]} : vector<2x8x96xbf16> to vector<2x8x16xbf16>
    "tpu.trace_start"() <{level = 10 : i32, message = "bqd,bkd->bqk"}> : () -> ()
    %cst_19 = arith.constant dense<0.000000e+00> : vector<2x8x8xf32>
    %39 = tpu.matmul %36, %37, %cst_19 {dimension_numbers = #tpu.dot_dimension_numbers<[2], [2], [1], [1], [0, 0, 0, 1, 1, 1], [0], [0]>} : vector<2x8x16xbf16>, vector<2x8x16xbf16>, vector<2x8x8xf32> -> vector<2x8x8xf32>
    "tpu.trace_stop"() : () -> ()
    %40 = vector.broadcast %15 : vector<2x1x8xf32> to vector<2x8x8xf32>
    %41 = arith.addf %39, %40 : vector<2x8x8xf32>
    %cst_20 = arith.constant dense<0xFF800000> : vector<2x8xf32>
    %42 = vector.multi_reduction <maximumf>, %41, %cst_20 [2] : vector<2x8x8xf32> to vector<2x8xf32>
    %43 = vector.shape_cast %42 : vector<2x8xf32> to vector<2x8x1xf32>
    %44 = vector.broadcast %43 : vector<2x8x1xf32> to vector<2x8x8xf32>
    %45 = arith.subf %41, %44 : vector<2x8x8xf32>
    %46 = math.exp %45 : vector<2x8x8xf32>
    %cst_21 = arith.constant dense<0.000000e+00> : vector<2x8xf32>
    %47 = vector.multi_reduction <add>, %46, %cst_21 [2] : vector<2x8x8xf32> to vector<2x8xf32>
    %48 = vector.shape_cast %47 : vector<2x8xf32> to vector<2x8x1xf32>
    %49 = tpu.reciprocal %48 {approx = true} : vector<2x8x1xf32> -> vector<2x8x1xf32>
    %50 = vector.broadcast %49 : vector<2x8x1xf32> to vector<2x8x8xf32>
    %51 = arith.mulf %46, %50 : vector<2x8x8xf32>
    %52 = arith.truncf %51 : vector<2x8x8xf32> to vector<2x8x8xbf16>
    "tpu.trace_start"() <{level = 10 : i32, message = "bqk,bkd->bqd"}> : () -> ()
    %cst_22 = arith.constant dense<0.000000e+00> : vector<2x8x16xf32>
    %53 = tpu.matmul %52, %38, %cst_22 {dimension_numbers = #tpu.dot_dimension_numbers<[2], [1], [1], [2], [0, 0, 0, 1, 1, 2], [0], [0]>} : vector<2x8x8xbf16>, vector<2x8x16xbf16>, vector<2x8x16xf32> -> vector<2x8x16xf32>
    "tpu.trace_stop"() : () -> ()
    %54 = arith.truncf %53 : vector<2x8x16xf32> to vector<2x8x16xbf16>
    %c0_23 = arith.constant 0 : index
    %c0_24 = arith.constant 0 : index
    %c16 = arith.constant 16 : index
    %55 = vector.load %arg22[%c0_23, %c0_24, %c16] : memref<2x8x32xbf16, #tpu.memory_space<vmem>>, vector<2x8x16xbf16>
    tpu.vector_store %arg22[%c0_23, %c0_24, %c16], %54 {strides = array<i32>} : memref<2x8x32xbf16, #tpu.memory_space<vmem>>, vector<2x8x16xbf16>,
    %c0_25 = arith.constant 0 : index
    %c0_26 = arith.constant 0 : index
    %c0_27 = arith.constant 0 : index
    %56 = vector.load %arg22[%c0_25, %c0_26, %c0_27] : memref<2x8x32xbf16, #tpu.memory_space<vmem>>, vector<2x8x32xbf16>
    %57 = vector.shape_cast %56 : vector<2x8x32xbf16> to vector<16x32xbf16>
    %c0_28 = arith.constant 0 : index
    %c0_29 = arith.constant 0 : index
    %c0_30 = arith.constant 0 : index
    %58 = vector.load %arg8[%c0_28, %c0_29, %c0_30] : memref<1x32x32xbf16, #tpu.memory_space<vmem>>, vector<1x32x32xbf16>
    %59 = vector.shape_cast %58 : vector<1x32x32xbf16> to vector<32x32xbf16>
    %cst_31 = arith.constant dense<0.000000e+00> : vector<16x32xf32>
    %60 = tpu.matmul %57, %59, %cst_31 {dimension_numbers = #tpu.dot_dimension_numbers<[1], [0], [0], [1], [0, 0, 1, 1], [], []>} : vector<16x32xbf16>, vector<32x32xbf16>, vector<16x32xf32> -> vector<16x32xf32>
    %c0_32 = arith.constant 0 : index
    %c0_33 = arith.constant 0 : index
    %c0_34 = arith.constant 0 : index
    %61 = vector.load %arg9[%c0_32, %c0_33, %c0_34] : memref<1x1x32xf32, #tpu.memory_space<vmem>>, vector<1x1x32xf32>
    %62 = vector.shape_cast %61 : vector<1x1x32xf32> to vector<1x32xf32>
    %63 = vector.broadcast %62 : vector<1x32xf32> to vector<16x32xf32>
    %64 = arith.addf %60, %63 : vector<16x32xf32>
    %65 = vector.shape_cast %64 : vector<16x32xf32> to vector<2x8x32xf32>
    %66 = arith.addf %3, %65 : vector<2x8x32xf32>
    %c0_35 = arith.constant 0 : index
    %c0_36 = arith.constant 0 : index
    %c0_37 = arith.constant 0 : index
    %67 = vector.load %arg10[%c0_35, %c0_36, %c0_37] : memref<1x1x32xf32, #tpu.memory_space<vmem>>, vector<1x1x32xf32>
    %68 = vector.shape_cast %67 : vector<1x1x32xf32> to vector<1x32xf32>
    %c0_38 = arith.constant 0 : index
    %c0_39 = arith.constant 0 : index
    %c0_40 = arith.constant 0 : index
    %69 = vector.load %arg11[%c0_38, %c0_39, %c0_40] : memref<1x1x32xf32, #tpu.memory_space<vmem>>, vector<1x1x32xf32>
    %70 = vector.shape_cast %69 : vector<1x1x32xf32> to vector<1x32xf32>
    %cst_41 = arith.constant dense<0.000000e+00> : vector<2x8xf32>
    %71 = vector.multi_reduction <add>, %66, %cst_41 [2] : vector<2x8x32xf32> to vector<2x8xf32>
    %72 = vector.shape_cast %71 : vector<2x8xf32> to vector<2x8x1xf32>
    %cst_42 = arith.constant 3.200000e+01 : f32
    %73 = vector.broadcast %cst_42 : f32 to vector<2x8x1xf32>
    %74 = arith.divf %72, %73 : vector<2x8x1xf32>
    %75 = vector.broadcast %74 : vector<2x8x1xf32> to vector<2x8x32xf32>
    %76 = arith.subf %66, %75 : vector<2x8x32xf32>
    %77 = arith.mulf %76, %76 : vector<2x8x32xf32>
    %cst_43 = arith.constant dense<0.000000e+00> : vector<2x8xf32>
    %78 = vector.multi_reduction <add>, %77, %cst_43 [2] : vector<2x8x32xf32> to vector<2x8xf32>
    %79 = vector.shape_cast %78 : vector<2x8xf32> to vector<2x8x1xf32>
    %cst_44 = arith.constant 3.200000e+01 : f32
    %80 = vector.broadcast %cst_44 : f32 to vector<2x8x1xf32>
    %81 = arith.divf %79, %80 : vector<2x8x1xf32>
    %82 = vector.broadcast %74 : vector<2x8x1xf32> to vector<2x8x32xf32>
    %83 = arith.subf %66, %82 : vector<2x8x32xf32>
    %cst_45 = arith.constant 9.99999996E-13 : f32
    %84 = vector.broadcast %cst_45 : f32 to vector<2x8x1xf32>
    %85 = arith.addf %81, %84 : vector<2x8x1xf32>
    %86 = math.rsqrt %85 : vector<2x8x1xf32>
    %87 = vector.broadcast %86 : vector<2x8x1xf32> to vector<2x8x32xf32>
    %88 = arith.mulf %83, %87 : vector<2x8x32xf32>
    %89 = vector.shape_cast %68 : vector<1x32xf32> to vector<1x1x32xf32>
    %90 = vector.broadcast %89 : vector<1x1x32xf32> to vector<2x8x32xf32>
    %91 = arith.mulf %88, %90 : vector<2x8x32xf32>
    %92 = vector.shape_cast %70 : vector<1x32xf32> to vector<1x1x32xf32>
    %93 = vector.broadcast %92 : vector<1x1x32xf32> to vector<2x8x32xf32>
    %94 = arith.addf %91, %93 : vector<2x8x32xf32>
    %95 = arith.truncf %94 : vector<2x8x32xf32> to vector<2x8x32xbf16>
    %96 = vector.shape_cast %95 : vector<2x8x32xbf16> to vector<16x32xbf16>
    %c0_46 = arith.constant 0 : index
    %c0_47 = arith.constant 0 : index
    %c0_48 = arith.constant 0 : index
    %97 = vector.load %arg12[%c0_46, %c0_47, %c0_48] : memref<1x32x64xbf16, #tpu.memory_space<vmem>>, vector<1x32x64xbf16>
    %98 = vector.shape_cast %97 : vector<1x32x64xbf16> to vector<32x64xbf16>
    %cst_49 = arith.constant dense<0.000000e+00> : vector<16x64xf32>
    %99 = tpu.matmul %96, %98, %cst_49 {dimension_numbers = #tpu.dot_dimension_numbers<[1], [0], [0], [1], [0, 0, 1, 1], [], []>} : vector<16x32xbf16>, vector<32x64xbf16>, vector<16x64xf32> -> vector<16x64xf32>
    %c0_50 = arith.constant 0 : index
    %c0_51 = arith.constant 0 : index
    %c0_52 = arith.constant 0 : index
    %100 = vector.load %arg13[%c0_50, %c0_51, %c0_52] : memref<1x1x64xf32, #tpu.memory_space<vmem>>, vector<1x1x64xf32>
    %101 = vector.shape_cast %100 : vector<1x1x64xf32> to vector<1x64xf32>
    %102 = vector.broadcast %101 : vector<1x64xf32> to vector<16x64xf32>
    %103 = arith.addf %99, %102 : vector<16x64xf32>
    %cst_53 = arith.constant 5.000000e-01 : f32
    %104 = vector.broadcast %cst_53 : f32 to vector<16x64xf32>
    %105 = arith.mulf %104, %103 : vector<16x64xf32>
    %cst_54 = arith.constant 4.471500e-02 : f32
    %106 = vector.broadcast %cst_54 : f32 to vector<16x64xf32>
    %107 = arith.mulf %106, %103 : vector<16x64xf32>
    %108 = arith.mulf %107, %103 : vector<16x64xf32>
    %109 = arith.mulf %108, %103 : vector<16x64xf32>
    %110 = arith.addf %103, %109 : vector<16x64xf32>
    %cst_55 = arith.constant 0.797884583 : f32
    %111 = vector.broadcast %cst_55 : f32 to vector<16x64xf32>
    %112 = arith.mulf %111, %110 : vector<16x64xf32>
    %113 = math.tanh %112 : vector<16x64xf32>
    %cst_56 = arith.constant 1.000000e+00 : f32
    %114 = vector.broadcast %cst_56 : f32 to vector<16x64xf32>
    %115 = arith.addf %114, %113 : vector<16x64xf32>
    %116 = arith.mulf %105, %115 : vector<16x64xf32>
    %117 = arith.truncf %116 : vector<16x64xf32> to vector<16x64xbf16>
    %c0_57 = arith.constant 0 : index
    %c0_58 = arith.constant 0 : index
    %c0_59 = arith.constant 0 : index
    %118 = vector.load %arg14[%c0_57, %c0_58, %c0_59] : memref<1x64x32xbf16, #tpu.memory_space<vmem>>, vector<1x64x32xbf16>
    %119 = vector.shape_cast %118 : vector<1x64x32xbf16> to vector<64x32xbf16>
    %cst_60 = arith.constant dense<0.000000e+00> : vector<16x32xf32>
    %120 = tpu.matmul %117, %119, %cst_60 {dimension_numbers = #tpu.dot_dimension_numbers<[1], [0], [0], [1], [0, 0, 1, 1], [], []>} : vector<16x64xbf16>, vector<64x32xbf16>, vector<16x32xf32> -> vector<16x32xf32>
    %c0_61 = arith.constant 0 : index
    %c0_62 = arith.constant 0 : index
    %c0_63 = arith.constant 0 : index
    %121 = vector.load %arg15[%c0_61, %c0_62, %c0_63] : memref<1x1x32xf32, #tpu.memory_space<vmem>>, vector<1x1x32xf32>
    %122 = vector.shape_cast %121 : vector<1x1x32xf32> to vector<1x32xf32>
    %123 = vector.broadcast %122 : vector<1x32xf32> to vector<16x32xf32>
    %124 = arith.addf %120, %123 : vector<16x32xf32>
    %125 = vector.shape_cast %124 : vector<16x32xf32> to vector<2x8x32xf32>
    %126 = arith.addf %94, %125 : vector<2x8x32xf32>
    %c0_64 = arith.constant 0 : index
    %c0_65 = arith.constant 0 : index
    %c0_66 = arith.constant 0 : index
    %127 = vector.load %arg16[%c0_64, %c0_65, %c0_66] : memref<1x1x32xf32, #tpu.memory_space<vmem>>, vector<1x1x32xf32>
    %128 = vector.shape_cast %127 : vector<1x1x32xf32> to vector<1x32xf32>
    %c0_67 = arith.constant 0 : index
    %c0_68 = arith.constant 0 : index
    %c0_69 = arith.constant 0 : index
    %129 = vector.load %arg17[%c0_67, %c0_68, %c0_69] : memref<1x1x32xf32, #tpu.memory_space<vmem>>, vector<1x1x32xf32>
    %130 = vector.shape_cast %129 : vector<1x1x32xf32> to vector<1x32xf32>
    %cst_70 = arith.constant dense<0.000000e+00> : vector<2x8xf32>
    %131 = vector.multi_reduction <add>, %126, %cst_70 [2] : vector<2x8x32xf32> to vector<2x8xf32>
    %132 = vector.shape_cast %131 : vector<2x8xf32> to vector<2x8x1xf32>
    %cst_71 = arith.constant 3.200000e+01 : f32
    %133 = vector.broadcast %cst_71 : f32 to vector<2x8x1xf32>
    %134 = arith.divf %132, %133 : vector<2x8x1xf32>
    %135 = vector.broadcast %134 : vector<2x8x1xf32> to vector<2x8x32xf32>
    %136 = arith.subf %126, %135 : vector<2x8x32xf32>
    %137 = arith.mulf %136, %136 : vector<2x8x32xf32>
    %cst_72 = arith.constant dense<0.000000e+00> : vector<2x8xf32>
    %138 = vector.multi_reduction <add>, %137, %cst_72 [2] : vector<2x8x32xf32> to vector<2x8xf32>
    %139 = vector.shape_cast %138 : vector<2x8xf32> to vector<2x8x1xf32>
    %cst_73 = arith.constant 3.200000e+01 : f32
    %140 = vector.broadcast %cst_73 : f32 to vector<2x8x1xf32>
    %141 = arith.divf %139, %140 : vector<2x8x1xf32>
    %142 = vector.broadcast %134 : vector<2x8x1xf32> to vector<2x8x32xf32>
    %143 = arith.subf %126, %142 : vector<2x8x32xf32>
    %cst_74 = arith.constant 9.99999996E-13 : f32
    %144 = vector.broadcast %cst_74 : f32 to vector<2x8x1xf32>
    %145 = arith.addf %141, %144 : vector<2x8x1xf32>
    %146 = math.rsqrt %145 : vector<2x8x1xf32>
    %147 = vector.broadcast %146 : vector<2x8x1xf32> to vector<2x8x32xf32>
    %148 = arith.mulf %143, %147 : vector<2x8x32xf32>
    %149 = vector.shape_cast %128 : vector<1x32xf32> to vector<1x1x32xf32>
    %150 = vector.broadcast %149 : vector<1x1x32xf32> to vector<2x8x32xf32>
    %151 = arith.mulf %148, %150 : vector<2x8x32xf32>
    %152 = vector.shape_cast %130 : vector<1x32xf32> to vector<1x1x32xf32>
    %153 = vector.broadcast %152 : vector<1x1x32xf32> to vector<2x8x32xf32>
    %154 = arith.addf %151, %153 : vector<2x8x32xf32>
    %c1_i32 = arith.constant 1 : i32
    %155 = arith.cmpi slt, %arg1, %c1_i32 : i32
    %156 = arith.extui %155 : i1 to i32
    %c0_i32_75 = arith.constant 0 : i32
    %157 = arith.cmpi ne, %156, %c0_i32_75 : i32
    scf.if %157 {
      %c0_78 = arith.constant 0 : index
      %c0_79 = arith.constant 0 : index
      %c0_80 = arith.constant 0 : index
      %161 = vector.load %arg21[%c0_78, %c0_79, %c0_80] : memref<2x8x32xf32, #tpu.memory_space<vmem>>, vector<2x8x32xf32>
      tpu.vector_store %arg21[%c0_78, %c0_79, %c0_80], %154 {strides = array<i32>} : memref<2x8x32xf32, #tpu.memory_space<vmem>>, vector<2x8x32xf32>,
    } else {
    }
    %c1_i32_76 = arith.constant 1 : i32
    %158 = arith.cmpi eq, %arg1, %c1_i32_76 : i32
    %159 = arith.extui %158 : i1 to i32
    %c0_i32_77 = arith.constant 0 : i32
    %160 = arith.cmpi ne, %159, %c0_i32_77 : i32
    scf.if %160 {
      %161 = vector.extract_strided_slice %154 {offsets = [0, 0, 0], sizes = [2, 1, 32], strides = [1, 1, 1]} : vector<2x8x32xf32> to vector<2x1x32xf32>
      %162 = vector.shape_cast %161 : vector<2x1x32xf32> to vector<2x32xf32>
      %163 = arith.truncf %162 : vector<2x32xf32> to vector<2x32xbf16>
      %c0_78 = arith.constant 0 : index
      %c0_79 = arith.constant 0 : index
      %164 = vector.load %arg18[%c0_78, %c0_79] : memref<32x128xbf16, #tpu.memory_space<vmem>>, vector<32x128xbf16>
      %cst_80 = arith.constant dense<0.000000e+00> : vector<2x128xf32>
      %165 = tpu.matmul %163, %164, %cst_80 {dimension_numbers = #tpu.dot_dimension_numbers<[1], [0], [0], [1], [0, 0, 1, 1], [], []>} : vector<2x32xbf16>, vector<32x128xbf16>, vector<2x128xf32> -> vector<2x128xf32>
      %c0_81 = arith.constant 0 : index
      %c0_82 = arith.constant 0 : index
      %166 = vector.load %arg19[%c0_81, %c0_82] : memref<1x128xf32, #tpu.memory_space<vmem>>, vector<1x128xf32>
      %167 = vector.broadcast %166 : vector<1x128xf32> to vector<2x128xf32>
      %168 = arith.addf %165, %167 : vector<2x128xf32>
      %cst_83 = arith.constant 0.000000e+00 : f32
      %169 = vector.broadcast %cst_83 : f32 to vector<2x128xf32>
      %170 = arith.subf %169, %168 : vector<2x128xf32>
      %171 = math.exp %170 : vector<2x128xf32>
      %cst_84 = arith.constant 1.000000e+00 : f32
      %172 = vector.broadcast %cst_84 : f32 to vector<2x128xf32>
      %173 = arith.addf %172, %171 : vector<2x128xf32>
      %cst_85 = arith.constant 1.000000e+00 : f32
      %174 = vector.broadcast %cst_85 : f32 to vector<2x128xf32>
      %175 = arith.divf %174, %173 : vector<2x128xf32>
      %c0_86 = arith.constant 0 : index
      %c0_87 = arith.constant 0 : index
      %176 = vector.load %arg20[%c0_86, %c0_87] : memref<2x128xf32, #tpu.memory_space<vmem>>, vector<2x128xf32>
      tpu.vector_store %arg20[%c0_86, %c0_87], %175 {strides = array<i32>} : memref<2x128xf32, #tpu.memory_space<vmem>>, vector<2x128xf32>,
    } else {
    }
    return
  }
  func.func @transform_0(%arg0: i32, %arg1: i32) -> (i32, i32, i32) {
    %c0_i32 = arith.constant 0 : i32
    %c0_i32_0 = arith.constant 0 : i32
    %c0_i32_1 = arith.constant 0 : i32
    return %arg0, %c0_i32, %c0_i32_0 : i32, i32, i32
  }
  func.func @transform_1(%arg0: i32, %arg1: i32) -> (i32, i32) {
    %c0_i32 = arith.constant 0 : i32
    %c0_i32_0 = arith.constant 0 : i32
    %c0_i32_1 = arith.constant 0 : i32
    return %c0_i32, %c0_i32_0 : i32, i32
  }
  func.func @transform_2(%arg0: i32, %arg1: i32) -> (i32, i32) {
    %c0_i32 = arith.constant 0 : i32
    %c0_i32_0 = arith.constant 0 : i32
    %c0_i32_1 = arith.constant 0 : i32
    return %c0_i32, %c0_i32_0 : i32, i32
  }
  func.func @transform_3(%arg0: i32, %arg1: i32) -> (i32, i32, i32) {
    %c0_i32 = arith.constant 0 : i32
    %c0_i32_0 = arith.constant 0 : i32
    %c0_i32_1 = arith.constant 0 : i32
    return %arg0, %c0_i32, %c0_i32_0 : i32, i32, i32
  }
  func.func @transform_4(%arg0: i32, %arg1: i32) -> (i32, i32, i32) {
    %c0_i32 = arith.constant 0 : i32
    %c0_i32_0 = arith.constant 0 : i32
    %c0_i32_1 = arith.constant 0 : i32
    return %arg1, %c0_i32, %c0_i32_0 : i32, i32, i32
  }
  func.func @transform_5(%arg0: i32, %arg1: i32) -> (i32, i32, i32) {
    %c0_i32 = arith.constant 0 : i32
    %c0_i32_0 = arith.constant 0 : i32
    %c0_i32_1 = arith.constant 0 : i32
    return %arg1, %c0_i32, %c0_i32_0 : i32, i32, i32
  }
  func.func @transform_6(%arg0: i32, %arg1: i32) -> (i32, i32, i32) {
    %c0_i32 = arith.constant 0 : i32
    %c0_i32_0 = arith.constant 0 : i32
    %c0_i32_1 = arith.constant 0 : i32
    return %arg1, %c0_i32, %c0_i32_0 : i32, i32, i32
  }
  func.func @transform_7(%arg0: i32, %arg1: i32) -> (i32, i32, i32) {
    %c0_i32 = arith.constant 0 : i32
    %c0_i32_0 = arith.constant 0 : i32
    %c0_i32_1 = arith.constant 0 : i32
    return %arg1, %c0_i32, %c0_i32_0 : i32, i32, i32
  }
  func.func @transform_8(%arg0: i32, %arg1: i32) -> (i32, i32, i32) {
    %c0_i32 = arith.constant 0 : i32
    %c0_i32_0 = arith.constant 0 : i32
    %c0_i32_1 = arith.constant 0 : i32
    return %arg1, %c0_i32, %c0_i32_0 : i32, i32, i32
  }
  func.func @transform_9(%arg0: i32, %arg1: i32) -> (i32, i32, i32) {
    %c0_i32 = arith.constant 0 : i32
    %c0_i32_0 = arith.constant 0 : i32
    %c0_i32_1 = arith.constant 0 : i32
    return %arg1, %c0_i32, %c0_i32_0 : i32, i32, i32
  }
  func.func @transform_10(%arg0: i32, %arg1: i32) -> (i32, i32, i32) {
    %c0_i32 = arith.constant 0 : i32
    %c0_i32_0 = arith.constant 0 : i32
    %c0_i32_1 = arith.constant 0 : i32
    return %arg1, %c0_i32, %c0_i32_0 : i32, i32, i32
  }
  func.func @transform_11(%arg0: i32, %arg1: i32) -> (i32, i32, i32) {
    %c0_i32 = arith.constant 0 : i32
    %c0_i32_0 = arith.constant 0 : i32
    %c0_i32_1 = arith.constant 0 : i32
    return %arg1, %c0_i32, %c0_i32_0 : i32, i32, i32
  }
  func.func @transform_12(%arg0: i32, %arg1: i32) -> (i32, i32, i32) {
    %c0_i32 = arith.constant 0 : i32
    %c0_i32_0 = arith.constant 0 : i32
    %c0_i32_1 = arith.constant 0 : i32
    return %arg1, %c0_i32, %c0_i32_0 : i32, i32, i32
  }
  func.func @transform_13(%arg0: i32, %arg1: i32) -> (i32, i32, i32) {
    %c0_i32 = arith.constant 0 : i32
    %c0_i32_0 = arith.constant 0 : i32
    %c0_i32_1 = arith.constant 0 : i32
    return %arg1, %c0_i32, %c0_i32_0 : i32, i32, i32
  }
  func.func @transform_14(%arg0: i32, %arg1: i32) -> (i32, i32, i32) {
    %c0_i32 = arith.constant 0 : i32
    %c0_i32_0 = arith.constant 0 : i32
    %c0_i32_1 = arith.constant 0 : i32
    return %arg1, %c0_i32, %c0_i32_0 : i32, i32, i32
  }
  func.func @transform_15(%arg0: i32, %arg1: i32) -> (i32, i32, i32) {
    %c0_i32 = arith.constant 0 : i32
    %c0_i32_0 = arith.constant 0 : i32
    %c0_i32_1 = arith.constant 0 : i32
    return %arg1, %c0_i32, %c0_i32_0 : i32, i32, i32
  }
  func.func @transform_16(%arg0: i32, %arg1: i32) -> (i32, i32) {
    %c0_i32 = arith.constant 0 : i32
    %c0_i32_0 = arith.constant 0 : i32
    %c0_i32_1 = arith.constant 0 : i32
    return %c0_i32, %c0_i32_0 : i32, i32
  }
  func.func @transform_17(%arg0: i32, %arg1: i32) -> (i32, i32) {
    %c0_i32 = arith.constant 0 : i32
    %c0_i32_0 = arith.constant 0 : i32
    %c0_i32_1 = arith.constant 0 : i32
    return %c0_i32, %c0_i32_0 : i32, i32
  }
  func.func @transform_18(%arg0: i32, %arg1: i32) -> (i32, i32) {
    %c0_i32 = arith.constant 0 : i32
    %c0_i32_0 = arith.constant 0 : i32
    return %arg0, %c0_i32 : i32, i32
  }
}

</mosaic_0001>

<llo_original>
// kernel: discriminator_forward.1
$region0: #{discriminator_forward.1}
  #allocation0 [shape = 'u32[]', space=smem, size = 0x4, offset = 0x4, fixed_abs, tag = 'smem constant byte address 0x4 - core index']
  #allocation1 [shape = 'u32[144,128]{1,0:T(1,128)}', space=vmem, size = 0x12000, scoped, tag = 'internal scratch']
  #allocation2 [shape = 'f32[2,8,32]{2,1,0:T(8,128)}', space=vmem, size = 0x2000, scoped, tag = 'scratch operand']
  #allocation3 [shape = 'bf16[2,8,32]{2,1,0:T(8,128)(2,1)}', space=vmem, size = 0x1000, scoped, tag = 'scratch operand']
  %s0 = inlined_call_operand.vmem [shape: bf16[2,8,32], index: 0, kind: input, shape index: {}]
  %s1 = inlined_call_operand.vmem [shape: f32[1,32], index: 1, kind: input, shape index: {}]
  %s2 = inlined_call_operand.vmem [shape: f32[1,32], index: 2, kind: input, shape index: {}]
  %s3 = inlined_call_operand.vmem [shape: f32[2,1,8], index: 3, kind: input, shape index: {}]
  %s4 = inlined_call_operand.vmem [shape: bf16[2,32,96], index: 4, kind: input, shape index: {}]
  %s5 = inlined_call_operand.vmem [shape: f32[2,1,96], index: 5, kind: input, shape index: {}]
  %s6 = inlined_call_operand.vmem [shape: bf16[2,32,32], index: 6, kind: input, shape index: {}]
  %s7 = inlined_call_operand.vmem [shape: f32[2,1,32], index: 7, kind: input, shape index: {}]
  %s8 = inlined_call_operand.vmem [shape: f32[2,1,32], index: 8, kind: input, shape index: {}]
  %s9 = inlined_call_operand.vmem [shape: f32[2,1,32], index: 9, kind: input, shape index: {}]
  %s10 = inlined_call_operand.vmem [shape: bf16[2,32,64], index: 10, kind: input, shape index: {}]
  %s11 = inlined_call_operand.vmem [shape: f32[2,1,64], index: 11, kind: input, shape index: {}]
  %s12 = inlined_call_operand.vmem [shape: bf16[2,64,32], index: 12, kind: input, shape index: {}]
  %s13 = inlined_call_operand.vmem [shape: f32[2,1,32], index: 13, kind: input, shape index: {}]
  %s14 = inlined_call_operand.vmem [shape: f32[2,1,32], index: 14, kind: input, shape index: {}]
  %s15 = inlined_call_operand.vmem [shape: f32[2,1,32], index: 15, kind: input, shape index: {}]
  %s16 = inlined_call_operand.vmem [shape: bf16[32,128], index: 16, kind: input, shape index: {}]
  %s17 = inlined_call_operand.vmem [shape: f32[1,128], index: 17, kind: input, shape index: {}]
  %s18 = inlined_call_operand.vmem [shape: f32[2,128], index: 18, kind: output, shape index: {}]
  %s19 = sld [smem:[#allocation0]]
  $region117: #{discriminator_forward.1} parent=0
    _
  %s21 = ssub.s32 1, %s19
  %s22 = scalar_select 0, %s21, %s19
  loop: start=0, step=1, limit=4
  $region2: #{discriminator_forward.1} parent=0 // loop_pre_header
    _
  $region3: #{discriminator_forward.1} parent=0 // loop_header
    %s24 = sphi 0, %s28
    %p25 = scmp.ge.s32.totalorder %s24, 4
    %s31 = sphi 0, %s43
    %s32 = sphi 0, %s39
    %s33 = sphi 0, %s31
    %s34 = sphi 0, %s32
    %s35 = sphi 0, %s33
    %s36 = sphi 0, %s34
    %s46 = sphi 0, %s48
    %s49 = sphi 0, %s46
    %s50 = sphi 0, %s49
    %s66 = sphi 0, %s50
    %s70 = sphi 0, %s70
    %s72 = sphi 0, %s70
    %s73 = sphi 0, %s72
    %s87 = sphi 0, %s73
    %s91 = sphi 0, %s91
    %s93 = sphi 0, %s91
    %s94 = sphi 0, %s93
    %s108 = sphi 0, %s94
    %s114 = sphi 0, %s116
    %s117 = sphi 0, %s114
    %s118 = sphi 0, %s117
    %s134 = sphi 0, %s118
    %s140 = sphi 0, %s142
    %s143 = sphi 0, %s140
    %s144 = sphi 0, %s143
    %s160 = sphi 0, %s144
    %s166 = sphi 0, %s168
    %s169 = sphi 0, %s166
    %s170 = sphi 0, %s169
    %s186 = sphi 0, %s170
    %s192 = sphi 0, %s194
    %s195 = sphi 0, %s192
    %s196 = sphi 0, %s195
    %s212 = sphi 0, %s196
    %s218 = sphi 0, %s220
    %s221 = sphi 0, %s218
    %s222 = sphi 0, %s221
    %s238 = sphi 0, %s222
    %s244 = sphi 0, %s246
    %s247 = sphi 0, %s244
    %s248 = sphi 0, %s247
    %s264 = sphi 0, %s248
    %s270 = sphi 0, %s272
    %s273 = sphi 0, %s270
    %s274 = sphi 0, %s273
    %s290 = sphi 0, %s274
    %s296 = sphi 0, %s298
    %s299 = sphi 0, %s296
    %s300 = sphi 0, %s299
    %s316 = sphi 0, %s300
    %s322 = sphi 0, %s324
    %s325 = sphi 0, %s322
    %s326 = sphi 0, %s325
    %s342 = sphi 0, %s326
    %s348 = sphi 0, %s350
    %s351 = sphi 0, %s348
    %s352 = sphi 0, %s351
    %s368 = sphi 0, %s352
    %s374 = sphi 0, %s376
    %s377 = sphi 0, %s374
    %s378 = sphi 0, %s377
    %s394 = sphi 0, %s378
    %s400 = sphi 0, %s402
    %s403 = sphi 0, %s400
    %s404 = sphi 0, %s403
    %s420 = sphi 0, %s404
    %s426 = sphi 0, %s428
    %s429 = sphi 0, %s426
    %s430 = sphi 0, %s429
    %s446 = sphi 0, %s430
    %s450 = sphi 0, %s450
    %s452 = sphi 0, %s450
    %s453 = sphi 0, %s452
    %s467 = sphi 0, %s453
    %s471 = sphi 0, %s471
    %s473 = sphi 0, %s471
    %s474 = sphi 0, %s473
    %s488 = sphi 0, %s474
    %s494 = sphi 0, %s496
    %s497 = sphi 0, %s494
    %s498 = sphi 0, %s497
    %s514 = sphi 0, %s498
  $region4: #{discriminator_forward.1} parent=0 // loop_header_branch
    %27 = sbr.rel (%p25) target = $region8
  $region5: #{discriminator_forward.1} parent=0 // loop_body
    %s29 = ssub.s32 %s24, 1
    %s30 = ssub.s32 %s24, 2
    %s37 = sadd.s32 1, %s32
    %p38 = scmp.ge.s32.totalorder %s37, 2
    %s39 = scalar_select %p38, 0, %s37
    %s40 = sadd.s32 1, %s31
    %s41 = scalar_select %p38, %s40, %s31
    %p42 = scmp.ge.s32.totalorder %s41, 1
    %s43 = scalar_select %p42, 0, %s41
    %s44 = ssub.s32 %s31, %s43
    %p45 = scmp.eq.s32.totalorder %s44, 0
    %s47 = sadd.s32 %s46, 1
    %s48 = scalar_select %p45, %s46, %s47
    %p51 = pneg %p45
    %p52 = scmp.eq.s32.totalorder %s24, 1
    %p53 = por %p51, %p52
    %p54 = scmp.ne.s32.totalorder %s46, %s49
    %p55 = scmp.eq.s32.totalorder %s24, 0
    %p56 = por %p54, %p55
    %p57 = scmp.ne.s32.totalorder %s46, %s49
    %p58 = scmp.eq.s32.totalorder %s29, 1
    %p59 = por %p57, %p58
    %p60 = scmp.ne.s32.totalorder %s49, %s50
    %p61 = scmp.eq.s32.totalorder %s29, 0
    %p62 = por %p60, %p61
    %p63 = scmp.ne.s32.totalorder %s49, %s50
    %p64 = scmp.eq.s32.totalorder %s30, 1
    %p65 = por %p63, %p64
    %p67 = scmp.ne.s32.totalorder %s50, %s66
    %p68 = scmp.eq.s32.totalorder %s30, 0
    %p69 = por %p67, %p68
    %s71 = sadd.s32 %s70, 1
    %p74 = scmp.eq.s32.totalorder %s24, 1
    %p75 = scmp.ne.s32.totalorder %s70, %s72
    %p76 = scmp.eq.s32.totalorder %s24, 0
    %p77 = por %p75, %p76
    %p78 = scmp.ne.s32.totalorder %s70, %s72
    %p79 = scmp.eq.s32.totalorder %s29, 1
    %p80 = por %p78, %p79
    %p81 = scmp.ne.s32.totalorder %s72, %s73
    %p82 = scmp.eq.s32.totalorder %s29, 0
    %p83 = por %p81, %p82
    %p84 = scmp.ne.s32.totalorder %s72, %s73
    %p85 = scmp.eq.s32.totalorder %s30, 1
    %p86 = por %p84, %p85
    %p88 = scmp.ne.s32.totalorder %s73, %s87
    %p89 = scmp.eq.s32.totalorder %s30, 0
    %p90 = por %p88, %p89
    %s92 = sadd.s32 %s91, 1
    %p95 = scmp.eq.s32.totalorder %s24, 1
    %p96 = scmp.ne.s32.totalorder %s91, %s93
    %p97 = scmp.eq.s32.totalorder %s24, 0
    %p98 = por %p96, %p97
    %p99 = scmp.ne.s32.totalorder %s91, %s93
    %p100 = scmp.eq.s32.totalorder %s29, 1
    %p101 = por %p99, %p100
    %p102 = scmp.ne.s32.totalorder %s93, %s94
    %p103 = scmp.eq.s32.totalorder %s29, 0
    %p104 = por %p102, %p103
    %p105 = scmp.ne.s32.totalorder %s93, %s94
    %p106 = scmp.eq.s32.totalorder %s30, 1
    %p107 = por %p105, %p106
    %p109 = scmp.ne.s32.totalorder %s94, %s108
    %p110 = scmp.eq.s32.totalorder %s30, 0
    %p111 = por %p109, %p110
    %s112 = ssub.s32 %s31, %s43
    %p113 = scmp.eq.s32.totalorder %s112, 0
    %s115 = sadd.s32 %s114, 1
    %s116 = scalar_select %p113, %s114, %s115
    %p119 = pneg %p113
    %p120 = scmp.eq.s32.totalorder %s24, 1
    %p121 = por %p119, %p120
    %p122 = scmp.ne.s32.totalorder %s114, %s117
    %p123 = scmp.eq.s32.totalorder %s24, 0
    %p124 = por %p122, %p123
    %p125 = scmp.ne.s32.totalorder %s114, %s117
    %p126 = scmp.eq.s32.totalorder %s29, 1
    %p127 = por %p125, %p126
    %p128 = scmp.ne.s32.totalorder %s117, %s118
    %p129 = scmp.eq.s32.totalorder %s29, 0
    %p130 = por %p128, %p129
    %p131 = scmp.ne.s32.totalorder %s117, %s118
    %p132 = scmp.eq.s32.totalorder %s30, 1
    %p133 = por %p131, %p132
    %p135 = scmp.ne.s32.totalorder %s118, %s134
    %p136 = scmp.eq.s32.totalorder %s30, 0
    %p137 = por %p135, %p136
    %s138 = ssub.s32 %s32, %s39
    %p139 = scmp.eq.s32.totalorder %s138, 0
    %s141 = sadd.s32 %s140, 1
    %s142 = scalar_select %p139, %s140, %s141
    %p145 = pneg %p139
    %p146 = scmp.eq.s32.totalorder %s24, 1
    %p147 = por %p145, %p146
    %p148 = scmp.ne.s32.totalorder %s140, %s143
    %p149 = scmp.eq.s32.totalorder %s24, 0
    %p150 = por %p148, %p149
    %p151 = scmp.ne.s32.totalorder %s140, %s143
    %p152 = scmp.eq.s32.totalorder %s29, 1
    %p153 = por %p151, %p152
    %p154 = scmp.ne.s32.totalorder %s143, %s144
    %p155 = scmp.eq.s32.totalorder %s29, 0
    %p156 = por %p154, %p155
    %p157 = scmp.ne.s32.totalorder %s143, %s144
    %p158 = scmp.eq.s32.totalorder %s30, 1
    %p159 = por %p157, %p158
    %p161 = scmp.ne.s32.totalorder %s144, %s160
    %p162 = scmp.eq.s32.totalorder %s30, 0
    %p163 = por %p161, %p162
    %s164 = ssub.s32 %s32, %s39
    %p165 = scmp.eq.s32.totalorder %s164, 0
    %s167 = sadd.s32 %s166, 1
    %s168 = scalar_select %p165, %s166, %s167
    %p171 = pneg %p165
    %p172 = scmp.eq.s32.totalorder %s24, 1
    %p173 = por %p171, %p172
    %p174 = scmp.ne.s32.totalorder %s166, %s169
    %p175 = scmp.eq.s32.totalorder %s24, 0
    %p176 = por %p174, %p175
    %p177 = scmp.ne.s32.totalorder %s166, %s169
    %p178 = scmp.eq.s32.totalorder %s29, 1
    %p179 = por %p177, %p178
    %p180 = scmp.ne.s32.totalorder %s169, %s170
    %p181 = scmp.eq.s32.totalorder %s29, 0
    %p182 = por %p180, %p181
    %p183 = scmp.ne.s32.totalorder %s169, %s170
    %p184 = scmp.eq.s32.totalorder %s30, 1
    %p185 = por %p183, %p184
    %p187 = scmp.ne.s32.totalorder %s170, %s186
    %p188 = scmp.eq.s32.totalorder %s30, 0
    %p189 = por %p187, %p188
    %s190 = ssub.s32 %s32, %s39
    %p191 = scmp.eq.s32.totalorder %s190, 0
    %s193 = sadd.s32 %s192, 1
    %s194 = scalar_select %p191, %s192, %s193
    %p197 = pneg %p191
    %p198 = scmp.eq.s32.totalorder %s24, 1
    %p199 = por %p197, %p198
    %p200 = scmp.ne.s32.totalorder %s192, %s195
    %p201 = scmp.eq.s32.totalorder %s24, 0
    %p202 = por %p200, %p201
    %p203 = scmp.ne.s32.totalorder %s192, %s195
    %p204 = scmp.eq.s32.totalorder %s29, 1
    %p205 = por %p203, %p204
    %p206 = scmp.ne.s32.totalorder %s195, %s196
    %p207 = scmp.eq.s32.totalorder %s29, 0
    %p208 = por %p206, %p207
    %p209 = scmp.ne.s32.totalorder %s195, %s196
    %p210 = scmp.eq.s32.totalorder %s30, 1
    %p211 = por %p209, %p210
    %p213 = scmp.ne.s32.totalorder %s196, %s212
    %p214 = scmp.eq.s32.totalorder %s30, 0
    %p215 = por %p213, %p214
    %s216 = ssub.s32 %s32, %s39
    %p217 = scmp.eq.s32.totalorder %s216, 0
    %s219 = sadd.s32 %s218, 1
    %s220 = scalar_select %p217, %s218, %s219
    %p223 = pneg %p217
    %p224 = scmp.eq.s32.totalorder %s24, 1
    %p225 = por %p223, %p224
    %p226 = scmp.ne.s32.totalorder %s218, %s221
    %p227 = scmp.eq.s32.totalorder %s24, 0
    %p228 = por %p226, %p227
    %p229 = scmp.ne.s32.totalorder %s218, %s221
    %p230 = scmp.eq.s32.totalorder %s29, 1
    %p231 = por %p229, %p230
    %p232 = scmp.ne.s32.totalorder %s221, %s222
    %p233 = scmp.eq.s32.totalorder %s29, 0
    %p234 = por %p232, %p233
    %p235 = scmp.ne.s32.totalorder %s221, %s222
    %p236 = scmp.eq.s32.totalorder %s30, 1
    %p237 = por %p235, %p236
    %p239 = scmp.ne.s32.totalorder %s222, %s238
    %p240 = scmp.eq.s32.totalorder %s30, 0
    %p241 = por %p239, %p240
    %s242 = ssub.s32 %s32, %s39
    %p243 = scmp.eq.s32.totalorder %s242, 0
    %s245 = sadd.s32 %s244, 1
    %s246 = scalar_select %p243, %s244, %s245
    %p249 = pneg %p243
    %p250 = scmp.eq.s32.totalorder %s24, 1
    %p251 = por %p249, %p250
    %p252 = scmp.ne.s32.totalorder %s244, %s247
    %p253 = scmp.eq.s32.totalorder %s24, 0
    %p254 = por %p252, %p253
    %p255 = scmp.ne.s32.totalorder %s244, %s247
    %p256 = scmp.eq.s32.totalorder %s29, 1
    %p257 = por %p255, %p256
    %p258 = scmp.ne.s32.totalorder %s247, %s248
    %p259 = scmp.eq.s32.totalorder %s29, 0
    %p260 = por %p258, %p259
    %p261 = scmp.ne.s32.totalorder %s247, %s248
    %p262 = scmp.eq.s32.totalorder %s30, 1
    %p263 = por %p261, %p262
    %p265 = scmp.ne.s32.totalorder %s248, %s264
    %p266 = scmp.eq.s32.totalorder %s30, 0
    %p267 = por %p265, %p266
    %s268 = ssub.s32 %s32, %s39
    %p269 = scmp.eq.s32.totalorder %s268, 0
    %s271 = sadd.s32 %s270, 1
    %s272 = scalar_select %p269, %s270, %s271
    %p275 = pneg %p269
    %p276 = scmp.eq.s32.totalorder %s24, 1
    %p277 = por %p275, %p276
    %p278 = scmp.ne.s32.totalorder %s270, %s273
    %p279 = scmp.eq.s32.totalorder %s24, 0
    %p280 = por %p278, %p279
    %p281 = scmp.ne.s32.totalorder %s270, %s273
    %p282 = scmp.eq.s32.totalorder %s29, 1
    %p283 = por %p281, %p282
    %p284 = scmp.ne.s32.totalorder %s273, %s274
    %p285 = scmp.eq.s32.totalorder %s29, 0
    %p286 = por %p284, %p285
    %p287 = scmp.ne.s32.totalorder %s273, %s274
    %p288 = scmp.eq.s32.totalorder %s30, 1
    %p289 = por %p287, %p288
    %p291 = scmp.ne.s32.totalorder %s274, %s290
    %p292 = scmp.eq.s32.totalorder %s30, 0
    %p293 = por %p291, %p292
    %s294 = ssub.s32 %s32, %s39
    %p295 = scmp.eq.s32.totalorder %s294, 0
    %s297 = sadd.s32 %s296, 1
    %s298 = scalar_select %p295, %s296, %s297
    %p301 = pneg %p295
    %p302 = scmp.eq.s32.totalorder %s24, 1
    %p303 = por %p301, %p302
    %p304 = scmp.ne.s32.totalorder %s296, %s299
    %p305 = scmp.eq.s32.totalorder %s24, 0
    %p306 = por %p304, %p305
    %p307 = scmp.ne.s32.totalorder %s296, %s299
    %p308 = scmp.eq.s32.totalorder %s29, 1
    %p309 = por %p307, %p308
    %p310 = scmp.ne.s32.totalorder %s299, %s300
    %p311 = scmp.eq.s32.totalorder %s29, 0
    %p312 = por %p310, %p311
    %p313 = scmp.ne.s32.totalorder %s299, %s300
    %p314 = scmp.eq.s32.totalorder %s30, 1
    %p315 = por %p313, %p314
    %p317 = scmp.ne.s32.totalorder %s300, %s316
    %p318 = scmp.eq.s32.totalorder %s30, 0
    %p319 = por %p317, %p318
    %s320 = ssub.s32 %s32, %s39
    %p321 = scmp.eq.s32.totalorder %s320, 0
    %s323 = sadd.s32 %s322, 1
    %s324 = scalar_select %p321, %s322, %s323
    %p327 = pneg %p321
    %p328 = scmp.eq.s32.totalorder %s24, 1
    %p329 = por %p327, %p328
    %p330 = scmp.ne.s32.totalorder %s322, %s325
    %p331 = scmp.eq.s32.totalorder %s24, 0
    %p332 = por %p330, %p331
    %p333 = scmp.ne.s32.totalorder %s322, %s325
    %p334 = scmp.eq.s32.totalorder %s29, 1
    %p335 = por %p333, %p334
    %p336 = scmp.ne.s32.totalorder %s325, %s326
    %p337 = scmp.eq.s32.totalorder %s29, 0
    %p338 = por %p336, %p337
    %p339 = scmp.ne.s32.totalorder %s325, %s326
    %p340 = scmp.eq.s32.totalorder %s30, 1
    %p341 = por %p339, %p340
    %p343 = scmp.ne.s32.totalorder %s326, %s342
    %p344 = scmp.eq.s32.totalorder %s30, 0
    %p345 = por %p343, %p344
    %s346 = ssub.s32 %s32, %s39
    %p347 = scmp.eq.s32.totalorder %s346, 0
    %s349 = sadd.s32 %s348, 1
    %s350 = scalar_select %p347, %s348, %s349
    %p353 = pneg %p347
    %p354 = scmp.eq.s32.totalorder %s24, 1
    %p355 = por %p353, %p354
    %p356 = scmp.ne.s32.totalorder %s348, %s351
    %p357 = scmp.eq.s32.totalorder %s24, 0
    %p358 = por %p356, %p357
    %p359 = scmp.ne.s32.totalorder %s348, %s351
    %p360 = scmp.eq.s32.totalorder %s29, 1
    %p361 = por %p359, %p360
    %p362 = scmp.ne.s32.totalorder %s351, %s352
    %p363 = scmp.eq.s32.totalorder %s29, 0
    %p364 = por %p362, %p363
    %p365 = scmp.ne.s32.totalorder %s351, %s352
    %p366 = scmp.eq.s32.totalorder %s30, 1
    %p367 = por %p365, %p366
    %p369 = scmp.ne.s32.totalorder %s352, %s368
    %p370 = scmp.eq.s32.totalorder %s30, 0
    %p371 = por %p369, %p370
    %s372 = ssub.s32 %s32, %s39
    %p373 = scmp.eq.s32.totalorder %s372, 0
    %s375 = sadd.s32 %s374, 1
    %s376 = scalar_select %p373, %s374, %s375
    %p379 = pneg %p373
    %p380 = scmp.eq.s32.totalorder %s24, 1
    %p381 = por %p379, %p380
    %p382 = scmp.ne.s32.totalorder %s374, %s377
    %p383 = scmp.eq.s32.totalorder %s24, 0
    %p384 = por %p382, %p383
    %p385 = scmp.ne.s32.totalorder %s374, %s377
    %p386 = scmp.eq.s32.totalorder %s29, 1
    %p387 = por %p385, %p386
    %p388 = scmp.ne.s32.totalorder %s377, %s378
    %p389 = scmp.eq.s32.totalorder %s29, 0
    %p390 = por %p388, %p389
    %p391 = scmp.ne.s32.totalorder %s377, %s378
    %p392 = scmp.eq.s32.totalorder %s30, 1
    %p393 = por %p391, %p392
    %p395 = scmp.ne.s32.totalorder %s378, %s394
    %p396 = scmp.eq.s32.totalorder %s30, 0
    %p397 = por %p395, %p396
    %s398 = ssub.s32 %s32, %s39
    %p399 = scmp.eq.s32.totalorder %s398, 0
    %s401 = sadd.s32 %s400, 1
    %s402 = scalar_select %p399, %s400, %s401
    %p405 = pneg %p399
    %p406 = scmp.eq.s32.totalorder %s24, 1
    %p407 = por %p405, %p406
    %p408 = scmp.ne.s32.totalorder %s400, %s403
    %p409 = scmp.eq.s32.totalorder %s24, 0
    %p410 = por %p408, %p409
    %p411 = scmp.ne.s32.totalorder %s400, %s403
    %p412 = scmp.eq.s32.totalorder %s29, 1
    %p413 = por %p411, %p412
    %p414 = scmp.ne.s32.totalorder %s403, %s404
    %p415 = scmp.eq.s32.totalorder %s29, 0
    %p416 = por %p414, %p415
    %p417 = scmp.ne.s32.totalorder %s403, %s404
    %p418 = scmp.eq.s32.totalorder %s30, 1
    %p419 = por %p417, %p418
    %p421 = scmp.ne.s32.totalorder %s404, %s420
    %p422 = scmp.eq.s32.totalorder %s30, 0
    %p423 = por %p421, %p422
    %s424 = ssub.s32 %s32, %s39
    %p425 = scmp.eq.s32.totalorder %s424, 0
    %s427 = sadd.s32 %s426, 1
    %s428 = scalar_select %p425, %s426, %s427
    %p431 = pneg %p425
    %p432 = scmp.eq.s32.totalorder %s24, 1
    %p433 = por %p431, %p432
    %p434 = scmp.ne.s32.totalorder %s426, %s429
    %p435 = scmp.eq.s32.totalorder %s24, 0
    %p436 = por %p434, %p435
    %p437 = scmp.ne.s32.totalorder %s426, %s429
    %p438 = scmp.eq.s32.totalorder %s29, 1
    %p439 = por %p437, %p438
    %p440 = scmp.ne.s32.totalorder %s429, %s430
    %p441 = scmp.eq.s32.totalorder %s29, 0
    %p442 = por %p440, %p441
    %p443 = scmp.ne.s32.totalorder %s429, %s430
    %p444 = scmp.eq.s32.totalorder %s30, 1
    %p445 = por %p443, %p444
    %p447 = scmp.ne.s32.totalorder %s430, %s446
    %p448 = scmp.eq.s32.totalorder %s30, 0
    %p449 = por %p447, %p448
    %s451 = sadd.s32 %s450, 1
    %p454 = scmp.eq.s32.totalorder %s24, 1
    %p455 = scmp.ne.s32.totalorder %s450, %s452
    %p456 = scmp.eq.s32.totalorder %s24, 0
    %p457 = por %p455, %p456
    %p458 = scmp.ne.s32.totalorder %s450, %s452
    %p459 = scmp.eq.s32.totalorder %s29, 1
    %p460 = por %p458, %p459
    %p461 = scmp.ne.s32.totalorder %s452, %s453
    %p462 = scmp.eq.s32.totalorder %s29, 0
    %p463 = por %p461, %p462
    %p464 = scmp.ne.s32.totalorder %s452, %s453
    %p465 = scmp.eq.s32.totalorder %s30, 1
    %p466 = por %p464, %p465
    %p468 = scmp.ne.s32.totalorder %s453, %s467
    %p469 = scmp.eq.s32.totalorder %s30, 0
    %p470 = por %p468, %p469
    %s472 = sadd.s32 %s471, 1
    %p475 = scmp.eq.s32.totalorder %s24, 1
    %p476 = scmp.ne.s32.totalorder %s471, %s473
    %p477 = scmp.eq.s32.totalorder %s24, 0
    %p478 = por %p476, %p477
    %p479 = scmp.ne.s32.totalorder %s471, %s473
    %p480 = scmp.eq.s32.totalorder %s29, 1
    %p481 = por %p479, %p480
    %p482 = scmp.ne.s32.totalorder %s473, %s474
    %p483 = scmp.eq.s32.totalorder %s29, 0
    %p484 = por %p482, %p483
    %p485 = scmp.ne.s32.totalorder %s473, %s474
    %p486 = scmp.eq.s32.totalorder %s30, 1
    %p487 = por %p485, %p486
    %p489 = scmp.ne.s32.totalorder %s474, %s488
    %p490 = scmp.eq.s32.totalorder %s30, 0
    %p491 = por %p489, %p490
    %s492 = ssub.s32 %s31, %s43
    %p493 = scmp.eq.s32.totalorder %s492, 0
    %s495 = sadd.s32 %s494, 1
    %s496 = scalar_select %p493, %s494, %s495
    %p499 = pneg %p493
    %p500 = scmp.eq.s32.totalorder %s24, 1
    %p501 = por %p499, %p500
    %p502 = scmp.ne.s32.totalorder %s494, %s497
    %p503 = scmp.eq.s32.totalorder %s24, 0
    %p504 = por %p502, %p503
    %p505 = scmp.ne.s32.totalorder %s494, %s497
    %p506 = scmp.eq.s32.totalorder %s29, 1
    %p507 = por %p505, %p506
    %p508 = scmp.ne.s32.totalorder %s497, %s498
    %p509 = scmp.eq.s32.totalorder %s29, 0
    %p510 = por %p508, %p509
    %p511 = scmp.ne.s32.totalorder %s497, %s498
    %p512 = scmp.eq.s32.totalorder %s30, 1
    %p513 = por %p511, %p512
    %p515 = scmp.ne.s32.totalorder %s498, %s514
    %p516 = scmp.eq.s32.totalorder %s30, 0
    %p517 = por %p515, %p516
    %p518 = scmp.le.s32.totalorder 1, %s24
    %p519 = scmp.lt.s32.totalorder %s24, 3
    %p520 = pnand %p518, %p519
    %p521 = pneg %p520
    // Predicated region
    $region9: #{discriminator_forward.1} parent=5 // pred_check
      _
    $region10: #{discriminator_forward.1} parent=5 // pred_check_branch
      %523 = sbr.rel (%p520) target = $region12
    $region11: #{discriminator_forward.1} parent=5 // pred_region
      %s524 = ssub.s32 %s24, 1
      // Predicated region
      $region13: #{discriminator_forward.1} parent=11 // pred_check
        %p525 = pneg %p62
      $region14: #{discriminator_forward.1} parent=11 // pred_check_branch
        %527 = sbr.rel (%p525) target = $region16
      $region15: #{discriminator_forward.1} parent=11 // pred_region
        %s528 = smul.u32 2, %s33
        %p529 = scmp.lt.s32.totalorder %s528, 1
        %s530 = scalar_select %p529, %s528, 1
        %s531 = smul.addr %s530, 4
        %s532 = scalar_lea.vmem %s0, %s531
        %s533 = smul.u32 2, %s33
      $region16: #{discriminator_forward.1} parent=11 // pred_fallthru
        _
      // Predicated region
      $region17: #{discriminator_forward.1} parent=11 // pred_check
        %p534 = pneg %p83
      $region18: #{discriminator_forward.1} parent=11 // pred_check_branch
        %536 = sbr.rel (%p534) target = $region20
      $region19: #{discriminator_forward.1} parent=11 // pred_region
        _
      $region20: #{discriminator_forward.1} parent=11 // pred_fallthru
        _
      // Predicated region
      $region21: #{discriminator_forward.1} parent=11 // pred_check
        %p537 = pneg %p104
      $region22: #{discriminator_forward.1} parent=11 // pred_check_branch
        %539 = sbr.rel (%p537) target = $region24
      $region23: #{discriminator_forward.1} parent=11 // pred_region
        _
      $region24: #{discriminator_forward.1} parent=11 // pred_fallthru
        _
      // Predicated region
      $region25: #{discriminator_forward.1} parent=11 // pred_check
        %p540 = pneg %p130
      $region26: #{discriminator_forward.1} parent=11 // pred_check_branch
        %542 = sbr.rel (%p540) target = $region28
      $region27: #{discriminator_forward.1} parent=11 // pred_region
        %s543 = smul.u32 2, %s33
        %p544 = scmp.lt.s32.totalorder %s543, 1
        %s545 = scalar_select %p544, %s543, 1
        %s546 = scalar_lea.vmem %s3, %s545
        %s547 = smul.u32 2, %s33
      $region28: #{discriminator_forward.1} parent=11 // pred_fallthru
        _
      // Predicated region
      $region29: #{discriminator_forward.1} parent=11 // pred_check
        %p548 = pneg %p463
      $region30: #{discriminator_forward.1} parent=11 // pred_check_branch
        %550 = sbr.rel (%p548) target = $region32
      $region31: #{discriminator_forward.1} parent=11 // pred_region
        _
      $region32: #{discriminator_forward.1} parent=11 // pred_fallthru
        _
      // Predicated region
      $region33: #{discriminator_forward.1} parent=11 // pred_check
        %p551 = pneg %p484
      $region34: #{discriminator_forward.1} parent=11 // pred_check_branch
        %553 = sbr.rel (%p551) target = $region36
      $region35: #{discriminator_forward.1} parent=11 // pred_region
        _
      $region36: #{discriminator_forward.1} parent=11 // pred_fallthru
        _
    $region12: #{discriminator_forward.1} parent=5 // pred_fallthru
      _
    %p554 = scmp.lt.s32.totalorder %s24, 2
    // Predicated region
    $region37: #{discriminator_forward.1} parent=5 // pred_check
      %p555 = pneg %p554
    $region38: #{discriminator_forward.1} parent=5 // pred_check_branch
      %557 = sbr.rel (%p555) target = $region40
    $region39: #{discriminator_forward.1} parent=5 // pred_region
      // Predicated region
      $region41: #{discriminator_forward.1} parent=39 // pred_check
        %p558 = pneg %p150
      $region42: #{discriminator_forward.1} parent=39 // pred_check_branch
        %560 = sbr.rel (%p558) target = $region44
      $region43: #{discriminator_forward.1} parent=39 // pred_region
        %p561 = scmp.lt.s32.totalorder %s32, 1
        %s562 = scalar_select %p561, %s32, 1
        %s563 = smul.addr %s562, 4
        %s564 = smul.addr %s563, 4
        %s565 = scalar_lea.vmem %s4, %s564
      $region44: #{discriminator_forward.1} parent=39 // pred_fallthru
        _
      // Predicated region
      $region45: #{discriminator_forward.1} parent=39 // pred_check
        %p566 = pneg %p176
      $region46: #{discriminator_forward.1} parent=39 // pred_check_branch
        %568 = sbr.rel (%p566) target = $region48
      $region47: #{discriminator_forward.1} parent=39 // pred_region
        %p569 = scmp.lt.s32.totalorder %s32, 1
        %s570 = scalar_select %p569, %s32, 1
        %s571 = scalar_lea.vmem %s5, %s570
      $region48: #{discriminator_forward.1} parent=39 // pred_fallthru
        _
      // Predicated region
      $region49: #{discriminator_forward.1} parent=39 // pred_check
        %p572 = pneg %p202
      $region50: #{discriminator_forward.1} parent=39 // pred_check_branch
        %574 = sbr.rel (%p572) target = $region52
      $region51: #{discriminator_forward.1} parent=39 // pred_region
        %p575 = scmp.lt.s32.totalorder %s32, 1
        %s576 = scalar_select %p575, %s32, 1
        %s577 = smul.addr %s576, 4
        %s578 = smul.addr %s577, 4
        %s579 = scalar_lea.vmem %s6, %s578
      $region52: #{discriminator_forward.1} parent=39 // pred_fallthru
        _
      // Predicated region
      $region53: #{discriminator_forward.1} parent=39 // pred_check
        %p580 = pneg %p228
      $region54: #{discriminator_forward.1} parent=39 // pred_check_branch
        %582 = sbr.rel (%p580) target = $region56
      $region55: #{discriminator_forward.1} parent=39 // pred_region
        %p583 = scmp.lt.s32.totalorder %s32, 1
        %s584 = scalar_select %p583, %s32, 1
        %s585 = scalar_lea.vmem %s7, %s584
      $region56: #{discriminator_forward.1} parent=39 // pred_fallthru
        _
      // Predicated region
      $region57: #{discriminator_forward.1} parent=39 // pred_check
        %p586 = pneg %p254
      $region58: #{discriminator_forward.1} parent=39 // pred_check_branch
        %588 = sbr.rel (%p586) target = $region60
      $region59: #{discriminator_forward.1} parent=39 // pred_region
        %p589 = scmp.lt.s32.totalorder %s32, 1
        %s590 = scalar_select %p589, %s32, 1
        %s591 = scalar_lea.vmem %s8, %s590
      $region60: #{discriminator_forward.1} parent=39 // pred_fallthru
        _
      // Predicated region
      $region61: #{discriminator_forward.1} parent=39 // pred_check
        %p592 = pneg %p280
      $region62: #{discriminator_forward.1} parent=39 // pred_check_branch
        %594 = sbr.rel (%p592) target = $region64
      $region63: #{discriminator_forward.1} parent=39 // pred_region
        %p595 = scmp.lt.s32.totalorder %s32, 1
        %s596 = scalar_select %p595, %s32, 1
        %s597 = scalar_lea.vmem %s9, %s596
      $region64: #{discriminator_forward.1} parent=39 // pred_fallthru
        _
      // Predicated region
      $region65: #{discriminator_forward.1} parent=39 // pred_check
        %p598 = pneg %p306
      $region66: #{discriminator_forward.1} parent=39 // pred_check_branch
        %600 = sbr.rel (%p598) target = $region68
      $region67: #{discriminator_forward.1} parent=39 // pred_region
        %p601 = scmp.lt.s32.totalorder %s32, 1
        %s602 = scalar_select %p601, %s32, 1
        %s603 = smul.addr %s602, 4
        %s604 = smul.addr %s603, 4
        %s605 = scalar_lea.vmem %s10, %s604
      $region68: #{discriminator_forward.1} parent=39 // pred_fallthru
        _
      // Predicated region
      $region69: #{discriminator_forward.1} parent=39 // pred_check
        %p606 = pneg %p332
      $region70: #{discriminator_forward.1} parent=39 // pred_check_branch
        %608 = sbr.rel (%p606) target = $region72
      $region71: #{discriminator_forward.1} parent=39 // pred_region
        %p609 = scmp.lt.s32.totalorder %s32, 1
        %s610 = scalar_select %p609, %s32, 1
        %s611 = scalar_lea.vmem %s11, %s610
      $region72: #{discriminator_forward.1} parent=39 // pred_fallthru
        _
      // Predicated region
      $region73: #{discriminator_forward.1} parent=39 // pred_check
        %p612 = pneg %p358
      $region74: #{discriminator_forward.1} parent=39 // pred_check_branch
        %614 = sbr.rel (%p612) target = $region76
      $region75: #{discriminator_forward.1} parent=39 // pred_region
        %p615 = scmp.lt.s32.totalorder %s32, 1
        %s616 = scalar_select %p615, %s32, 1
        %s617 = smul.addr %s616, 8
        %s618 = smul.addr %s617, 4
        %s619 = scalar_lea.vmem %s12, %s618
      $region76: #{discriminator_forward.1} parent=39 // pred_fallthru
        _
      // Predicated region
      $region77: #{discriminator_forward.1} parent=39 // pred_check
        %p620 = pneg %p384
      $region78: #{discriminator_forward.1} parent=39 // pred_check_branch
        %622 = sbr.rel (%p620) target = $region80
      $region79: #{discriminator_forward.1} parent=39 // pred_region
        %p623 = scmp.lt.s32.totalorder %s32, 1
        %s624 = scalar_select %p623, %s32, 1
        %s625 = scalar_lea.vmem %s13, %s624
      $region80: #{discriminator_forward.1} parent=39 // pred_fallthru
        _
      // Predicated region
      $region81: #{discriminator_forward.1} parent=39 // pred_check
        %p626 = pneg %p410
      $region82: #{discriminator_forward.1} parent=39 // pred_check_branch
        %628 = sbr.rel (%p626) target = $region84
      $region83: #{discriminator_forward.1} parent=39 // pred_region
        %p629 = scmp.lt.s32.totalorder %s32, 1
        %s630 = scalar_select %p629, %s32, 1
        %s631 = scalar_lea.vmem %s14, %s630
      $region84: #{discriminator_forward.1} parent=39 // pred_fallthru
        _
      // Predicated region
      $region85: #{discriminator_forward.1} parent=39 // pred_check
        %p632 = pneg %p436
      $region86: #{discriminator_forward.1} parent=39 // pred_check_branch
        %634 = sbr.rel (%p632) target = $region88
      $region87: #{discriminator_forward.1} parent=39 // pred_region
        %p635 = scmp.lt.s32.totalorder %s32, 1
        %s636 = scalar_select %p635, %s32, 1
        %s637 = scalar_lea.vmem %s15, %s636
      $region88: #{discriminator_forward.1} parent=39 // pred_fallthru
        _
    $region40: #{discriminator_forward.1} parent=5 // pred_fallthru
      _
    %p638 = scmp.le.s32.totalorder 1, %s24
    %p639 = scmp.lt.s32.totalorder %s24, 3
    %p640 = pnand %p638, %p639
    %p641 = pneg %p640
    // Predicated region
    $region89: #{discriminator_forward.1} parent=5 // pred_check
      _
    $region90: #{discriminator_forward.1} parent=5 // pred_check_branch
      %643 = sbr.rel (%p640) target = $region92
    $region91: #{discriminator_forward.1} parent=5 // pred_region
      %s644 = ssub.s32 %s24, 1
      %s645 = smul.u32 2, %s33
      %p646 = scmp.lt.s32.totalorder %s645, 1
      %s647 = scalar_select %p646, %s645, 1
      %s648 = smul.addr %s647, 4
      %s649 = scalar_lea.vmem %s0, %s648
      %p650 = pneg %p62
      %p651 = pneg %p59
      %p652 = pneg %p83
      %p653 = pneg %p80
      %p654 = pneg %p104
      %p655 = pneg %p101
      %s656 = smul.u32 2, %s33
      %p657 = scmp.lt.s32.totalorder %s656, 1
      %s658 = scalar_select %p657, %s656, 1
      %s659 = scalar_lea.vmem %s3, %s658
      %p660 = pneg %p130
      %p661 = pneg %p127
      %p662 = scmp.lt.s32.totalorder %s34, 1
      %s663 = scalar_select %p662, %s34, 1
      %s664 = smul.addr %s663, 4
      %s665 = smul.addr %s664, 4
      %s666 = scalar_lea.vmem %s4, %s665
      %p667 = pneg %p156
      %p668 = pneg %p153
      %p669 = scmp.lt.s32.totalorder %s34, 1
      %s670 = scalar_select %p669, %s34, 1
      %s671 = scalar_lea.vmem %s5, %s670
      %p672 = pneg %p182
      %p673 = pneg %p179
      %p674 = scmp.lt.s32.totalorder %s34, 1
      %s675 = scalar_select %p674, %s34, 1
      %s676 = smul.addr %s675, 4
      %s677 = smul.addr %s676, 4
      %s678 = scalar_lea.vmem %s6, %s677
      %p679 = pneg %p208
      %p680 = pneg %p205
      %p681 = scmp.lt.s32.totalorder %s34, 1
      %s682 = scalar_select %p681, %s34, 1
      %s683 = scalar_lea.vmem %s7, %s682
      %p684 = pneg %p234
      %p685 = pneg %p231
      %p686 = scmp.lt.s32.totalorder %s34, 1
      %s687 = scalar_select %p686, %s34, 1
      %s688 = scalar_lea.vmem %s8, %s687
      %p689 = pneg %p260
      %p690 = pneg %p257
      %p691 = scmp.lt.s32.totalorder %s34, 1
      %s692 = scalar_select %p691, %s34, 1
      %s693 = scalar_lea.vmem %s9, %s692
      %p694 = pneg %p286
      %p695 = pneg %p283
      %p696 = scmp.lt.s32.totalorder %s34, 1
      %s697 = scalar_select %p696, %s34, 1
      %s698 = smul.addr %s697, 4
      %s699 = smul.addr %s698, 4
      %s700 = scalar_lea.vmem %s10, %s699
      %p701 = pneg %p312
      %p702 = pneg %p309
      %p703 = scmp.lt.s32.totalorder %s34, 1
      %s704 = scalar_select %p703, %s34, 1
      %s705 = scalar_lea.vmem %s11, %s704
      %p706 = pneg %p338
      %p707 = pneg %p335
      %p708 = scmp.lt.s32.totalorder %s34, 1
      %s709 = scalar_select %p708, %s34, 1
      %s710 = smul.addr %s709, 8
      %s711 = smul.addr %s710, 4
      %s712 = scalar_lea.vmem %s12, %s711
      %p713 = pneg %p364
      %p714 = pneg %p361
      %p715 = scmp.lt.s32.totalorder %s34, 1
      %s716 = scalar_select %p715, %s34, 1
      %s717 = scalar_lea.vmem %s13, %s716
      %p718 = pneg %p390
      %p719 = pneg %p387
      %p720 = scmp.lt.s32.totalorder %s34, 1
      %s721 = scalar_select %p720, %s34, 1
      %s722 = scalar_lea.vmem %s14, %s721
      %p723 = pneg %p416
      %p724 = pneg %p413
      %p725 = scmp.lt.s32.totalorder %s34, 1
      %s726 = scalar_select %p725, %s34, 1
      %s727 = scalar_lea.vmem %s15, %s726
      %p728 = pneg %p442
      %p729 = pneg %p439
      %p730 = pneg %p463
      %p731 = pneg %p460
      %p732 = pneg %p484
      %p733 = pneg %p481
      %p734 = pneg %p510
      %p735 = pneg %p507
      %p736 = scmp.lt.s32.totalorder %s33, 0
      %s737 = scalar_select %p736, %s33, 0
      %s738 = smul.addr %s737, 2
      %s739 = scalar_lea.vmem %s18, %s738
      %s740 = smul.u32 2, %s33
      %p741 = scmp.lt.s32.totalorder %s740, 1
      %s742 = scalar_select %p741, %s740, 1
      %s743 = smul.addr %s742, 4
      %s744 = scalar_lea.vmem %s0, %s743
      %s745 = smul.u32 2, %s33
      %s746 = smul.u32 2, %s33
      %p747 = scmp.lt.s32.totalorder %s746, 1
      %s748 = scalar_select %p747, %s746, 1
      %s749 = scalar_lea.vmem %s3, %s748
      %s750 = smul.u32 2, %s33
      %p751 = scmp.lt.s32.totalorder %s34, 1
      %s752 = scalar_select %p751, %s34, 1
      %s753 = smul.addr %s752, 4
      %s754 = smul.addr %s753, 4
      %s755 = scalar_lea.vmem %s4, %s754
      %p756 = scmp.lt.s32.totalorder %s34, 1
      %s757 = scalar_select %p756, %s34, 1
      %s758 = scalar_lea.vmem %s5, %s757
      %p759 = scmp.lt.s32.totalorder %s34, 1
      %s760 = scalar_select %p759, %s34, 1
      %s761 = smul.addr %s760, 4
      %s762 = smul.addr %s761, 4
      %s763 = scalar_lea.vmem %s6, %s762
      %p764 = scmp.lt.s32.totalorder %s34, 1
      %s765 = scalar_select %p764, %s34, 1
      %s766 = scalar_lea.vmem %s7, %s765
      %p767 = scmp.lt.s32.totalorder %s34, 1
      %s768 = scalar_select %p767, %s34, 1
      %s769 = scalar_lea.vmem %s8, %s768
      %p770 = scmp.lt.s32.totalorder %s34, 1
      %s771 = scalar_select %p770, %s34, 1
      %s772 = scalar_lea.vmem %s9, %s771
      %p773 = scmp.lt.s32.totalorder %s34, 1
      %s774 = scalar_select %p773, %s34, 1
      %s775 = smul.addr %s774, 4
      %s776 = smul.addr %s775, 4
      %s777 = scalar_lea.vmem %s10, %s776
      %p778 = scmp.lt.s32.totalorder %s34, 1
      %s779 = scalar_select %p778, %s34, 1
      %s780 = scalar_lea.vmem %s11, %s779
      %p781 = scmp.lt.s32.totalorder %s34, 1
      %s782 = scalar_select %p781, %s34, 1
      %s783 = smul.addr %s782, 8
      %s784 = smul.addr %s783, 4
      %s785 = scalar_lea.vmem %s12, %s784
      %p786 = scmp.lt.s32.totalorder %s34, 1
      %s787 = scalar_select %p786, %s34, 1
      %s788 = scalar_lea.vmem %s13, %s787
      %p789 = scmp.lt.s32.totalorder %s34, 1
      %s790 = scalar_select %p789, %s34, 1
      %s791 = scalar_lea.vmem %s14, %s790
      %p792 = scmp.lt.s32.totalorder %s34, 1
      %s793 = scalar_select %p792, %s34, 1
      %s794 = scalar_lea.vmem %s15, %s793
      %p795 = scmp.lt.s32.totalorder %s33, 0
      %s796 = scalar_select %p795, %s33, 0
      %s797 = smul.addr %s796, 2
      %s798 = scalar_lea.vmem %s18, %s797
      %p800 = scmp.eq.s32.totalorder %s34, 0
      // Predicated region
      $region93: #{discriminator_forward.1} parent=91 // pred_check
        %p801 = pneg %p800
      $region94: #{discriminator_forward.1} parent=91 // pred_check_branch
        %803 = sbr.rel (%p801) target = $region96
      $region95: #{discriminator_forward.1} parent=91 // pred_region
        %v804 = vld [vmem:[%s744] sm:$0xf]
        %v805 = vld [vmem:[%s744 + $0x4] sm:$0xf]
        %v806 = vunpack.c.l.bf16 %v804
        %v807 = vunpack.c.l.bf16 %v805
        %v808 = vld [vmem:[%s1] sm:$0x1]
        %v809 = vld [vmem:[%s2] sm:$0x1]
        %vm810 = vcmask 261120
        %v811 = vsel %vm810, %v806, 0.0
        %812 = vadd.xlane.f32.xlu0 %v811
        %v813 = vpop.xlane.xlu0 %812
        %v814 = vsel %vm810, %v807, 0.0
        %815 = vadd.xlane.f32.xlu0 %v814
        %v816 = vpop.xlane.xlu0 %815
        %v817 = vrcp.pop 32.0
        %v818 = vmul.f32 %v813, %v817
        %v819 = vmul.f32 %v816, %v817
        %v820 = vsub.f32 %v806, %v818
        %v821 = vsub.f32 %v807, %v819
        %v822 = vmul.f32 %v820, %v820
        %v823 = vmul.f32 %v821, %v821
        %v824 = vsel %vm810, %v822, 0.0
        %825 = vadd.xlane.f32.xlu0 %v824
        %v826 = vpop.xlane.xlu0 %825
        %v827 = vsel %vm810, %v823, 0.0
        %828 = vadd.xlane.f32.xlu0 %v827
        %v829 = vpop.xlane.xlu0 %828
        %v830 = vmul.f32 %v826, %v817
        %v831 = vmul.f32 %v829, %v817
        %v832 = vadd.f32 %v830, 1e-12
        %v833 = vadd.f32 %v831, 1e-12
        %v834 = vrsqrt.pop %v832
        %v835 = vrsqrt.pop %v833
        %v836 = vmul.f32 %v820, %v834
        %v837 = vmul.f32 %v821, %v835
        %v839 = vlaneseq
        %v840 = vshrl.u32 %v839, 7
        %v841 = vsub.s32 0, %v840
        %v842 = vrot.slane %v808, %v841
        %v844 = vmul.f32 %v836, %v842
        %v845 = vmul.f32 %v837, %v842
        %v847 = vlaneseq
        %v848 = vshrl.u32 %v847, 7
        %v849 = vsub.s32 0, %v848
        %v850 = vrot.slane %v809, %v849
        %v852 = vadd.f32 %v844, %v850
        %v853 = vadd.f32 %v845, %v850
        %854 = vst.msk [vmem:[#allocation2] sm:$0xff] %vm810, %v852
        %855 = vst.msk [vmem:[#allocation2 + $0x8] sm:$0xff] %vm810, %v853
      $region96: #{discriminator_forward.1} parent=91 // pred_fallthru
        _
      %v856 = vld [vmem:[#allocation2] sm:$0xff]
      %v857 = vld [vmem:[#allocation2 + $0x8] sm:$0xff]
      %v858 = vpack.c.bf16 %v856, %v856
      %v859 = vpack.c.bf16 %v857, %v857
      %v860 = vld [vmem:[%s755] sm:$0xf]
      %v861 = vld [vmem:[%s755 + $0x4] sm:$0xf]
      %v862 = vld [vmem:[%s755 + $0x8] sm:$0xf]
      %v863 = vld [vmem:[%s755 + $0xc] sm:$0xf]
      %v864 = vld [vmem:[%s758] sm:$0x1]
      %v866 = vlaneseq
      %v867 = vshrl.u32 %v866, 7
      %v868 = vsub.s32 0, %v867
      %v869 = vrot.slane %v864, %v868
      %v873 = vunpack.c.l.b16 %v858
      %v874 = vunpack.c.l.b16 %v859
      %v875 = vpack.c.b16 %v874, %v873
      %v880 = vunpack.c.l.b16 %v860
      %v881 = vunpack.c.l.b16 %v861
      %v882 = vunpack.c.l.b16 %v862
      %v883 = vunpack.c.l.b16 %v863
      %v884 = vpack.c.b16 %v881, %v880
      %v885 = vpack.c.b16 %v883, %v882
      %vm888 = vcmask 261120
      %v890 = vsel %vm888, %v875, 0
      %892 = vmatprep.subr.bf16.mxu0 0
      %893 = vmatpush1.bf16.msra.mxu0 %v884
      %894 = vmatprep.subr.bf16.mxu0 0
      %895 = vmatpush1.bf16.msra.mxu0 %v885
      %896 = vmatprep.subr.bf16.mxu0 0
      %897 = vmatpush1.bf16.msra.mxu0 0
      %898 = vmatprep.subr.bf16.mxu0 0
      %899 = vmatpush1.bf16.msra.mxu0 0
      %900 = vmatprep.subr.bf16.mxu0 0
      %901 = vmatpush1.bf16.msra.mxu0 0
      %902 = vmatprep.subr.bf16.mxu0 0
      %903 = vmatpush1.bf16.msra.mxu0 0
      %904 = vmatprep.subr.bf16.mxu0 0
      %905 = vmatpush1.bf16.msra.mxu0 0
      %906 = vmatprep.subr.bf16.mxu0 0
      %907 = vmatpush1.bf16.msra.mxu0 0
      %908 = vmatprep.subr.bf16.mxu0 0
      %909 = vmatpush1.bf16.msra.mxu0 0
      %910 = vmatprep.subr.bf16.mxu0 0
      %911 = vmatpush1.bf16.msra.mxu0 0
      %912 = vmatprep.subr.bf16.mxu0 0
      %913 = vmatpush1.bf16.msra.mxu0 0
      %914 = vmatprep.subr.bf16.mxu0 0
      %915 = vmatpush1.bf16.msra.mxu0 0
      %916 = vmatprep.subr.bf16.mxu0 0
      %917 = vmatpush1.bf16.msra.mxu0 0
      %918 = vmatprep.subr.bf16.mxu0 0
      %919 = vmatpush1.bf16.msra.mxu0 0
      %920 = vmatprep.subr.bf16.mxu0 0
      %921 = vmatpush1.bf16.msra.mxu0 0
      %922 = vmatprep.subr.bf16.mxu0 0
      %923 = vmatpush1.bf16.msra.mxu0 0
      %924 = vmatprep.mubr.bf16.mxu0 0
      %925 = vmatmul.mubr.bf16.gmra.mrb[0].mxu0 %v890
      %v926 = vpop.f32.mrb[0].mxu0
      %v927 = vadd.f32 %v869, %v926
      %v928 = vpop.f32.mrb[0].mxu0
      %v929 = vpop.f32.mrb[0].mxu0
      %v930 = vadd.f32 %v869, %v929
      %v931 = vpop.f32.mrb[0].mxu0
      %932 = vdwg.mxu0
      %v933 = vpack.c.bf16 %v930, %v927
      %v935 = vunpack.c.l.b16 %v933
      %v936 = vunpack.c.h.b16 %v933
      %v937 = vpack.c.b16 %v935, %v935
      %v938 = vpack.c.b16 %v936, %v936
      %v939 = vld [vmem:[%s749] sm:$0x1]
      %v940 = vld [vmem:[%s749 + $0x1] sm:$0x1]
      %v943 = vlaneseq
      %v944 = vshrl.u32 %v943, 7
      %v945 = vsub.s32 0, %v944
      %v946 = vrot.slane %v939, %v945
      %v947 = vlaneseq
      %v948 = vshrl.u32 %v947, 7
      %v949 = vsub.s32 0, %v948
      %v950 = vrot.slane %v940, %v949
      %953 = vrot.lane.b32.xlu0 %v937, 96
      %v954 = vpop.permute.xlu0 %953
      %vm955 = vcmask 130048
      %v957 = vsel %vm955, %v937, 0
      %v960 = vsel %vm955, %v954, 0
      %962 = vmatprep.subr.bf16.mxu0 0
      %963 = vmatpush1.bf16.xpose.msra.mxu0 %v960
      %964 = vmatprep.subr.bf16.mxu0 0
      %965 = vmatpush1.bf16.xpose.msra.mxu0 0
      %966 = vmatprep.subr.bf16.mxu0 0
      %967 = vmatpush1.bf16.xpose.msra.mxu0 0
      %968 = vmatprep.subr.bf16.mxu0 0
      %969 = vmatpush1.bf16.xpose.msra.mxu0 0
      %970 = vmatprep.subr.bf16.mxu0 0
      %971 = vmatpush1.bf16.xpose.msra.mxu0 0
      %972 = vmatprep.subr.bf16.mxu0 0
      %973 = vmatpush1.bf16.xpose.msra.mxu0 0
      %974 = vmatprep.subr.bf16.mxu0 0
      %975 = vmatpush1.bf16.xpose.msra.mxu0 0
      %976 = vmatprep.subr.bf16.mxu0 0
      %977 = vmatpush1.bf16.xpose.msra.mxu0 0
      %978 = vmatprep.subr.bf16.mxu0 0
      %979 = vmatpush1.bf16.xpose.msra.mxu0 0
      %980 = vmatprep.subr.bf16.mxu0 0
      %981 = vmatpush1.bf16.xpose.msra.mxu0 0
      %982 = vmatprep.subr.bf16.mxu0 0
      %983 = vmatpush1.bf16.xpose.msra.mxu0 0
      %984 = vmatprep.subr.bf16.mxu0 0
      %985 = vmatpush1.bf16.xpose.msra.mxu0 0
      %986 = vmatprep.subr.bf16.mxu0 0
      %987 = vmatpush1.bf16.xpose.msra.mxu0 0
      %988 = vmatprep.subr.bf16.mxu0 0
      %989 = vmatpush1.bf16.xpose.msra.mxu0 0
      %990 = vmatprep.subr.bf16.mxu0 0
      %991 = vmatpush1.bf16.xpose.msra.mxu0 0
      %992 = vmatprep.subr.bf16.mxu0 0
      %993 = vmatpush1.bf16.xpose.msra.mxu0 0
      %994 = vmatprep.mubr.bf16.mxu0 0
      %995 = vmatmul.mubr.bf16.gmra.mrb[0].mxu0 %v957
      %v996 = vpop.f32.mrb[0].mxu0
      %v997 = vadd.f32 %v946, %v996
      %v998 = vpop.f32.mrb[0].mxu0
      %v999 = vpop.f32.mrb[0].mxu0
      %v1000 = vpop.f32.mrb[0].mxu0
      %1001 = vdwg.mxu0
      %1002 = vrot.lane.b32.xlu0 %v938, 96
      %v1003 = vpop.permute.xlu0 %1002
      %v1005 = vsel %vm955, %v938, 0
      %v1008 = vsel %vm955, %v1003, 0
      %1010 = vmatprep.subr.bf16.mxu0 0
      %1011 = vmatpush1.bf16.xpose.msra.mxu0 %v1008
      %1012 = vmatprep.subr.bf16.mxu0 0
      %1013 = vmatpush1.bf16.xpose.msra.mxu0 0
      %1014 = vmatprep.subr.bf16.mxu0 0
      %1015 = vmatpush1.bf16.xpose.msra.mxu0 0
      %1016 = vmatprep.subr.bf16.mxu0 0
      %1017 = vmatpush1.bf16.xpose.msra.mxu0 0
      %1018 = vmatprep.subr.bf16.mxu0 0
      %1019 = vmatpush1.bf16.xpose.msra.mxu0 0
      %1020 = vmatprep.subr.bf16.mxu0 0
      %1021 = vmatpush1.bf16.xpose.msra.mxu0 0
      %1022 = vmatprep.subr.bf16.mxu0 0
      %1023 = vmatpush1.bf16.xpose.msra.mxu0 0
      %1024 = vmatprep.subr.bf16.mxu0 0
      %1025 = vmatpush1.bf16.xpose.msra.mxu0 0
      %1026 = vmatprep.subr.bf16.mxu0 0
      %1027 = vmatpush1.bf16.xpose.msra.mxu0 0
      %1028 = vmatprep.subr.bf16.mxu0 0
      %1029 = vmatpush1.bf16.xpose.msra.mxu0 0
      %1030 = vmatprep.subr.bf16.mxu0 0
      %1031 = vmatpush1.bf16.xpose.msra.mxu0 0
      %1032 = vmatprep.subr.bf16.mxu0 0
      %1033 = vmatpush1.bf16.xpose.msra.mxu0 0
      %1034 = vmatprep.subr.bf16.mxu0 0
      %1035 = vmatpush1.bf16.xpose.msra.mxu0 0
      %1036 = vmatprep.subr.bf16.mxu0 0
      %1037 = vmatpush1.bf16.xpose.msra.mxu0 0
      %1038 = vmatprep.subr.bf16.mxu0 0
      %1039 = vmatpush1.bf16.xpose.msra.mxu0 0
      %1040 = vmatprep.subr.bf16.mxu0 0
      %1041 = vmatpush1.bf16.xpose.msra.mxu0 0
      %1042 = vmatprep.mubr.bf16.mxu0 0
      %1043 = vmatmul.mubr.bf16.gmra.mrb[0].mxu0 %v1005
      %v1044 = vpop.f32.mrb[0].mxu0
      %v1045 = vadd.f32 %v950, %v1044
      %v1046 = vpop.f32.mrb[0].mxu0
      %v1047 = vpop.f32.mrb[0].mxu0
      %v1048 = vpop.f32.mrb[0].mxu0
      %1049 = vdwg.mxu0
      %vm1050 = vcmask 64512
      %v1051 = vsel %vm1050, %v997, -inf
      %1052 = vmax.xlane.f32.xlu0 %v1051
      %v1053 = vpop.xlane.xlu0 %1052
      %v1054 = vsel %vm1050, %v1045, -inf
      %1055 = vmax.xlane.f32.xlu0 %v1054
      %v1056 = vpop.xlane.xlu0 %1055
      %v1057 = vsub.f32 %v997, %v1053
      %v1058 = vsub.f32 %v1045, %v1056
      %v1059 = vmul.f32 %v1057, 1.442695
      %v1060 = vpow.pop %v1059
      %v1061 = vmul.f32 %v1058, 1.442695
      %v1062 = vpow.pop %v1061
      %v1063 = vsel %vm1050, %v1060, 0.0
      %1064 = vadd.xlane.f32.xlu0 %v1063
      %v1065 = vpop.xlane.xlu0 %1064
      %v1066 = vsel %vm1050, %v1062, 0.0
      %1067 = vadd.xlane.f32.xlu0 %v1066
      %v1068 = vpop.xlane.xlu0 %1067
      %v1069 = vrcp.pop %v1065
      %v1070 = vrcp.pop %v1068
      %v1071 = vmul.f32 %v1060, %v1069
      %v1072 = vmul.f32 %v1062, %v1070
      %v1073 = vpack.c.bf16 %v1071, %v1071
      %v1074 = vpack.c.bf16 %v1072, %v1072
      %1075 = vrot.lane.b32.xlu0 %v937, 64
      %v1076 = vpop.permute.xlu0 %1075
      %v1078 = vsel %vm1050, %v1073, 0
      %vm1080 = vcmask 1043456
      %v1082 = vsel %vm1080, %v1076, 0
      %1084 = vmatprep.subr.bf16.mxu0 0
      %1085 = vmatpush1.bf16.msra.mxu0 %v1082
      %1086 = vmatprep.subr.bf16.mxu0 0
      %1087 = vmatpush1.bf16.msra.mxu0 0
      %1088 = vmatprep.subr.bf16.mxu0 0
      %1089 = vmatpush1.bf16.msra.mxu0 0
      %1090 = vmatprep.subr.bf16.mxu0 0
      %1091 = vmatpush1.bf16.msra.mxu0 0
      %1092 = vmatprep.subr.bf16.mxu0 0
      %1093 = vmatpush1.bf16.msra.mxu0 0
      %1094 = vmatprep.subr.bf16.mxu0 0
      %1095 = vmatpush1.bf16.msra.mxu0 0
      %1096 = vmatprep.subr.bf16.mxu0 0
      %1097 = vmatpush1.bf16.msra.mxu0 0
      %1098 = vmatprep.subr.bf16.mxu0 0
      %1099 = vmatpush1.bf16.msra.mxu0 0
      %1100 = vmatprep.subr.bf16.mxu0 0
      %1101 = vmatpush1.bf16.msra.mxu0 0
      %1102 = vmatprep.subr.bf16.mxu0 0
      %1103 = vmatpush1.bf16.msra.mxu0 0
      %1104 = vmatprep.subr.bf16.mxu0 0
      %1105 = vmatpush1.bf16.msra.mxu0 0
      %1106 = vmatprep.subr.bf16.mxu0 0
      %1107 = vmatpush1.bf16.msra.mxu0 0
      %1108 = vmatprep.subr.bf16.mxu0 0
      %1109 = vmatpush1.bf16.msra.mxu0 0
      %1110 = vmatprep.subr.bf16.mxu0 0
      %1111 = vmatpush1.bf16.msra.mxu0 0
      %1112 = vmatprep.subr.bf16.mxu0 0
      %1113 = vmatpush1.bf16.msra.mxu0 0
      %1114 = vmatprep.subr.bf16.mxu0 0
      %1115 = vmatpush1.bf16.msra.mxu0 0
      %1116 = vmatprep.mubr.bf16.mxu0 0
      %1117 = vmatmul.mubr.bf16.gmra.mrb[0].mxu0 %v1078
      %v1118 = vpop.f32.mrb[0].mxu0
      %v1119 = vadd.f32 0.0, %v1118
      %v1120 = vpop.f32.mrb[0].mxu0
      %v1121 = vpop.f32.mrb[0].mxu0
      %v1122 = vpop.f32.mrb[0].mxu0
      %1123 = vdwg.mxu0
      %1124 = vrot.lane.b32.xlu0 %v938, 64
      %v1125 = vpop.permute.xlu0 %1124
      %v1127 = vsel %vm1050, %v1074, 0
      %v1130 = vsel %vm1080, %v1125, 0
      %1132 = vmatprep.subr.bf16.mxu0 0
      %1133 = vmatpush1.bf16.msra.mxu0 %v1130
      %1134 = vmatprep.subr.bf16.mxu0 0
      %1135 = vmatpush1.bf16.msra.mxu0 0
      %1136 = vmatprep.subr.bf16.mxu0 0
      %1137 = vmatpush1.bf16.msra.mxu0 0
      %1138 = vmatprep.subr.bf16.mxu0 0
      %1139 = vmatpush1.bf16.msra.mxu0 0
      %1140 = vmatprep.subr.bf16.mxu0 0
      %1141 = vmatpush1.bf16.msra.mxu0 0
      %1142 = vmatprep.subr.bf16.mxu0 0
      %1143 = vmatpush1.bf16.msra.mxu0 0
      %1144 = vmatprep.subr.bf16.mxu0 0
      %1145 = vmatpush1.bf16.msra.mxu0 0
      %1146 = vmatprep.subr.bf16.mxu0 0
      %1147 = vmatpush1.bf16.msra.mxu0 0
      %1148 = vmatprep.subr.bf16.mxu0 0
      %1149 = vmatpush1.bf16.msra.mxu0 0
      %1150 = vmatprep.subr.bf16.mxu0 0
      %1151 = vmatpush1.bf16.msra.mxu0 0
      %1152 = vmatprep.subr.bf16.mxu0 0
      %1153 = vmatpush1.bf16.msra.mxu0 0
      %1154 = vmatprep.subr.bf16.mxu0 0
      %1155 = vmatpush1.bf16.msra.mxu0 0
      %1156 = vmatprep.subr.bf16.mxu0 0
      %1157 = vmatpush1.bf16.msra.mxu0 0
      %1158 = vmatprep.subr.bf16.mxu0 0
      %1159 = vmatpush1.bf16.msra.mxu0 0
      %1160 = vmatprep.subr.bf16.mxu0 0
      %1161 = vmatpush1.bf16.msra.mxu0 0
      %1162 = vmatprep.subr.bf16.mxu0 0
      %1163 = vmatpush1.bf16.msra.mxu0 0
      %1164 = vmatprep.mubr.bf16.mxu0 0
      %1165 = vmatmul.mubr.bf16.gmra.mrb[0].mxu0 %v1127
      %v1166 = vpop.f32.mrb[0].mxu0
      %v1167 = vadd.f32 0.0, %v1166
      %v1168 = vpop.f32.mrb[0].mxu0
      %v1169 = vpop.f32.mrb[0].mxu0
      %v1170 = vpop.f32.mrb[0].mxu0
      %1171 = vdwg.mxu0
      %v1172 = vpack.c.bf16 %v1119, %v1119
      %v1173 = vpack.c.bf16 %v1167, %v1167
      %vm1174 = vcmask 125952
      %1175 = vst.msk [vmem:[#allocation3] sm:$0xf] %vm1174, %v1172
      %1176 = vst.msk [vmem:[#allocation3 + $0x4] sm:$0xf] %vm1174, %v1173
      %1177 = vrot.lane.b32.xlu0 %v937, 112
      %v1178 = vpop.permute.xlu0 %1177
      %1179 = vrot.lane.b32.xlu0 %v937, 80
      %v1180 = vpop.permute.xlu0 %1179
      %v1182 = vsel %vm955, %v1178, 0
      %v1185 = vsel %vm955, %v1180, 0
      %1187 = vmatprep.subr.bf16.mxu0 0
      %1188 = vmatpush1.bf16.xpose.msra.mxu0 %v1185
      %1189 = vmatprep.subr.bf16.mxu0 0
      %1190 = vmatpush1.bf16.xpose.msra.mxu0 0
      %1191 = vmatprep.subr.bf16.mxu0 0
      %1192 = vmatpush1.bf16.xpose.msra.mxu0 0
      %1193 = vmatprep.subr.bf16.mxu0 0
      %1194 = vmatpush1.bf16.xpose.msra.mxu0 0
      %1195 = vmatprep.subr.bf16.mxu0 0
      %1196 = vmatpush1.bf16.xpose.msra.mxu0 0
      %1197 = vmatprep.subr.bf16.mxu0 0
      %1198 = vmatpush1.bf16.xpose.msra.mxu0 0
      %1199 = vmatprep.subr.bf16.mxu0 0
      %1200 = vmatpush1.bf16.xpose.msra.mxu0 0
      %1201 = vmatprep.subr.bf16.mxu0 0
      %1202 = vmatpush1.bf16.xpose.msra.mxu0 0
      %1203 = vmatprep.subr.bf16.mxu0 0
      %1204 = vmatpush1.bf16.xpose.msra.mxu0 0
      %1205 = vmatprep.subr.bf16.mxu0 0
      %1206 = vmatpush1.bf16.xpose.msra.mxu0 0
      %1207 = vmatprep.subr.bf16.mxu0 0
      %1208 = vmatpush1.bf16.xpose.msra.mxu0 0
      %1209 = vmatprep.subr.bf16.mxu0 0
      %1210 = vmatpush1.bf16.xpose.msra.mxu0 0
      %1211 = vmatprep.subr.bf16.mxu0 0
      %1212 = vmatpush1.bf16.xpose.msra.mxu0 0
      %1213 = vmatprep.subr.bf16.mxu0 0
      %1214 = vmatpush1.bf16.xpose.msra.mxu0 0
      %1215 = vmatprep.subr.bf16.mxu0 0
      %1216 = vmatpush1.bf16.xpose.msra.mxu0 0
      %1217 = vmatprep.subr.bf16.mxu0 0
      %1218 = vmatpush1.bf16.xpose.msra.mxu0 0
      %1219 = vmatprep.mubr.bf16.mxu0 0
      %1220 = vmatmul.mubr.bf16.gmra.mrb[0].mxu0 %v1182
      %v1221 = vpop.f32.mrb[0].mxu0
      %v1222 = vadd.f32 %v946, %v1221
      %v1223 = vpop.f32.mrb[0].mxu0
      %v1224 = vpop.f32.mrb[0].mxu0
      %v1225 = vpop.f32.mrb[0].mxu0
      %1226 = vdwg.mxu0
      %1227 = vrot.lane.b32.xlu0 %v938, 112
      %v1228 = vpop.permute.xlu0 %1227
      %1229 = vrot.lane.b32.xlu0 %v938, 80
      %v1230 = vpop.permute.xlu0 %1229
      %v1232 = vsel %vm955, %v1228, 0
      %v1235 = vsel %vm955, %v1230, 0
      %1237 = vmatprep.subr.bf16.mxu0 0
      %1238 = vmatpush1.bf16.xpose.msra.mxu0 %v1235
      %1239 = vmatprep.subr.bf16.mxu0 0
      %1240 = vmatpush1.bf16.xpose.msra.mxu0 0
      %1241 = vmatprep.subr.bf16.mxu0 0
      %1242 = vmatpush1.bf16.xpose.msra.mxu0 0
      %1243 = vmatprep.subr.bf16.mxu0 0
      %1244 = vmatpush1.bf16.xpose.msra.mxu0 0
      %1245 = vmatprep.subr.bf16.mxu0 0
      %1246 = vmatpush1.bf16.xpose.msra.mxu0 0
      %1247 = vmatprep.subr.bf16.mxu0 0
      %1248 = vmatpush1.bf16.xpose.msra.mxu0 0
      %1249 = vmatprep.subr.bf16.mxu0 0
      %1250 = vmatpush1.bf16.xpose.msra.mxu0 0
      %1251 = vmatprep.subr.bf16.mxu0 0
      %1252 = vmatpush1.bf16.xpose.msra.mxu0 0
      %1253 = vmatprep.subr.bf16.mxu0 0
      %1254 = vmatpush1.bf16.xpose.msra.mxu0 0
      %1255 = vmatprep.subr.bf16.mxu0 0
      %1256 = vmatpush1.bf16.xpose.msra.mxu0 0
      %1257 = vmatprep.subr.bf16.mxu0 0
      %1258 = vmatpush1.bf16.xpose.msra.mxu0 0
      %1259 = vmatprep.subr.bf16.mxu0 0
      %1260 = vmatpush1.bf16.xpose.msra.mxu0 0
      %1261 = vmatprep.subr.bf16.mxu0 0
      %1262 = vmatpush1.bf16.xpose.msra.mxu0 0
      %1263 = vmatprep.subr.bf16.mxu0 0
      %1264 = vmatpush1.bf16.xpose.msra.mxu0 0
      %1265 = vmatprep.subr.bf16.mxu0 0
      %1266 = vmatpush1.bf16.xpose.msra.mxu0 0
      %1267 = vmatprep.subr.bf16.mxu0 0
      %1268 = vmatpush1.bf16.xpose.msra.mxu0 0
      %1269 = vmatprep.mubr.bf16.mxu0 0
      %1270 = vmatmul.mubr.bf16.gmra.mrb[0].mxu0 %v1232
      %v1271 = vpop.f32.mrb[0].mxu0
      %v1272 = vadd.f32 %v950, %v1271
      %v1273 = vpop.f32.mrb[0].mxu0
      %v1274 = vpop.f32.mrb[0].mxu0
      %v1275 = vpop.f32.mrb[0].mxu0
      %1276 = vdwg.mxu0
      %v1277 = vsel %vm1050, %v1222, -inf
      %1278 = vmax.xlane.f32.xlu0 %v1277
      %v1279 = vpop.xlane.xlu0 %1278
      %v1280 = vsel %vm1050, %v1272, -inf
      %1281 = vmax.xlane.f32.xlu0 %v1280
      %v1282 = vpop.xlane.xlu0 %1281
      %v1283 = vsub.f32 %v1222, %v1279
      %v1284 = vsub.f32 %v1272, %v1282
      %v1285 = vmul.f32 %v1283, 1.442695
      %v1286 = vpow.pop %v1285
      %v1287 = vmul.f32 %v1284, 1.442695
      %v1288 = vpow.pop %v1287
      %v1289 = vsel %vm1050, %v1286, 0.0
      %1290 = vadd.xlane.f32.xlu0 %v1289
      %v1291 = vpop.xlane.xlu0 %1290
      %v1292 = vsel %vm1050, %v1288, 0.0
      %1293 = vadd.xlane.f32.xlu0 %v1292
      %v1294 = vpop.xlane.xlu0 %1293
      %v1295 = vrcp.pop %v1291
      %v1296 = vrcp.pop %v1294
      %v1297 = vmul.f32 %v1286, %v1295
      %v1298 = vmul.f32 %v1288, %v1296
      %v1299 = vpack.c.bf16 %v1297, %v1297
      %v1300 = vpack.c.bf16 %v1298, %v1298
      %1301 = vrot.lane.b32.xlu0 %v937, 48
      %v1302 = vpop.permute.xlu0 %1301
      %v1304 = vsel %vm1050, %v1299, 0
      %v1307 = vsel %vm1080, %v1302, 0
      %1309 = vmatprep.subr.bf16.mxu0 0
      %1310 = vmatpush1.bf16.msra.mxu0 %v1307
      %1311 = vmatprep.subr.bf16.mxu0 0
      %1312 = vmatpush1.bf16.msra.mxu0 0
      %1313 = vmatprep.subr.bf16.mxu0 0
      %1314 = vmatpush1.bf16.msra.mxu0 0
      %1315 = vmatprep.subr.bf16.mxu0 0
      %1316 = vmatpush1.bf16.msra.mxu0 0
      %1317 = vmatprep.subr.bf16.mxu0 0
      %1318 = vmatpush1.bf16.msra.mxu0 0
      %1319 = vmatprep.subr.bf16.mxu0 0
      %1320 = vmatpush1.bf16.msra.mxu0 0
      %1321 = vmatprep.subr.bf16.mxu0 0
      %1322 = vmatpush1.bf16.msra.mxu0 0
      %1323 = vmatprep.subr.bf16.mxu0 0
      %1324 = vmatpush1.bf16.msra.mxu0 0
      %1325 = vmatprep.subr.bf16.mxu0 0
      %1326 = vmatpush1.bf16.msra.mxu0 0
      %1327 = vmatprep.subr.bf16.mxu0 0
      %1328 = vmatpush1.bf16.msra.mxu0 0
      %1329 = vmatprep.subr.bf16.mxu0 0
      %1330 = vmatpush1.bf16.msra.mxu0 0
      %1331 = vmatprep.subr.bf16.mxu0 0
      %1332 = vmatpush1.bf16.msra.mxu0 0
      %1333 = vmatprep.subr.bf16.mxu0 0
      %1334 = vmatpush1.bf16.msra.mxu0 0
      %1335 = vmatprep.subr.bf16.mxu0 0
      %1336 = vmatpush1.bf16.msra.mxu0 0
      %1337 = vmatprep.subr.bf16.mxu0 0
      %1338 = vmatpush1.bf16.msra.mxu0 0
      %1339 = vmatprep.subr.bf16.mxu0 0
      %1340 = vmatpush1.bf16.msra.mxu0 0
      %1341 = vmatprep.mubr.bf16.mxu0 0
      %1342 = vmatmul.mubr.bf16.gmra.mrb[0].mxu0 %v1304
      %v1343 = vpop.f32.mrb[0].mxu0
      %v1344 = vadd.f32 0.0, %v1343
      %v1345 = vpop.f32.mrb[0].mxu0
      %v1346 = vpop.f32.mrb[0].mxu0
      %v1347 = vpop.f32.mrb[0].mxu0
      %1348 = vdwg.mxu0
      %1349 = vrot.lane.b32.xlu0 %v938, 48
      %v1350 = vpop.permute.xlu0 %1349
      %v1352 = vsel %vm1050, %v1300, 0
      %v1355 = vsel %vm1080, %v1350, 0
      %1357 = vmatprep.subr.bf16.mxu0 0
      %1358 = vmatpush1.bf16.msra.mxu0 %v1355
      %1359 = vmatprep.subr.bf16.mxu0 0
      %1360 = vmatpush1.bf16.msra.mxu0 0
      %1361 = vmatprep.subr.bf16.mxu0 0
      %1362 = vmatpush1.bf16.msra.mxu0 0
      %1363 = vmatprep.subr.bf16.mxu0 0
      %1364 = vmatpush1.bf16.msra.mxu0 0
      %1365 = vmatprep.subr.bf16.mxu0 0
      %1366 = vmatpush1.bf16.msra.mxu0 0
      %1367 = vmatprep.subr.bf16.mxu0 0
      %1368 = vmatpush1.bf16.msra.mxu0 0
      %1369 = vmatprep.subr.bf16.mxu0 0
      %1370 = vmatpush1.bf16.msra.mxu0 0
      %1371 = vmatprep.subr.bf16.mxu0 0
      %1372 = vmatpush1.bf16.msra.mxu0 0
      %1373 = vmatprep.subr.bf16.mxu0 0
      %1374 = vmatpush1.bf16.msra.mxu0 0
      %1375 = vmatprep.subr.bf16.mxu0 0
      %1376 = vmatpush1.bf16.msra.mxu0 0
      %1377 = vmatprep.subr.bf16.mxu0 0
      %1378 = vmatpush1.bf16.msra.mxu0 0
      %1379 = vmatprep.subr.bf16.mxu0 0
      %1380 = vmatpush1.bf16.msra.mxu0 0
      %1381 = vmatprep.subr.bf16.mxu0 0
      %1382 = vmatpush1.bf16.msra.mxu0 0
      %1383 = vmatprep.subr.bf16.mxu0 0
      %1384 = vmatpush1.bf16.msra.mxu0 0
      %1385 = vmatprep.subr.bf16.mxu0 0
      %1386 = vmatpush1.bf16.msra.mxu0 0
      %1387 = vmatprep.subr.bf16.mxu0 0
      %1388 = vmatpush1.bf16.msra.mxu0 0
      %1389 = vmatprep.mubr.bf16.mxu0 0
      %1390 = vmatmul.mubr.bf16.gmra.mrb[0].mxu0 %v1352
      %v1391 = vpop.f32.mrb[0].mxu0
      %v1392 = vadd.f32 0.0, %v1391
      %v1393 = vpop.f32.mrb[0].mxu0
      %v1394 = vpop.f32.mrb[0].mxu0
      %v1395 = vpop.f32.mrb[0].mxu0
      %1396 = vdwg.mxu0
      %v1397 = vpack.c.bf16 %v1344, %v1344
      %v1398 = vpack.c.bf16 %v1392, %v1392
      %v1401 = vunpack.c.l.b16 %v1397
      %v1402 = vunpack.c.l.b16 %v1398
      %v1403 = vpack.c.b16 %v1401, %v1401
      %v1404 = vpack.c.b16 %v1402, %v1402
      %1405 = vrot.lane.b32.xlu0 %v1403, 16
      %v1406 = vpop.permute.xlu0 %1405
      %1407 = vrot.lane.b32.xlu0 %v1404, 16
      %v1408 = vpop.permute.xlu0 %1407
      %vm1411 = vcmask 257152
      %1412 = vst.msk [vmem:[#allocation3] sm:$0xf] %vm1411, %v1406
      %1413 = vst.msk [vmem:[#allocation3 + $0x4] sm:$0xf] %vm1411, %v1408
      %v1414 = vld [vmem:[#allocation3] sm:$0xf]
      %v1415 = vld [vmem:[#allocation3 + $0x4] sm:$0xf]
      %v1416 = vld [vmem:[%s763] sm:$0xf]
      %v1417 = vld [vmem:[%s763 + $0x4] sm:$0xf]
      %v1418 = vld [vmem:[%s763 + $0x8] sm:$0xf]
      %v1419 = vld [vmem:[%s763 + $0xc] sm:$0xf]
      %v1420 = vld [vmem:[%s766] sm:$0x1]
      %v1422 = vlaneseq
      %v1423 = vshrl.u32 %v1422, 7
      %v1424 = vsub.s32 0, %v1423
      %v1425 = vrot.slane %v1420, %v1424
      %v1429 = vunpack.c.l.b16 %v1414
      %v1430 = vunpack.c.l.b16 %v1415
      %v1431 = vpack.c.b16 %v1430, %v1429
      %v1436 = vunpack.c.l.b16 %v1416
      %v1437 = vunpack.c.l.b16 %v1417
      %v1438 = vunpack.c.l.b16 %v1418
      %v1439 = vunpack.c.l.b16 %v1419
      %v1440 = vpack.c.b16 %v1437, %v1436
      %v1441 = vpack.c.b16 %v1439, %v1438
      %v1445 = vsel %vm888, %v1431, 0
      %1447 = vmatprep.subr.bf16.mxu0 0
      %1448 = vmatpush1.bf16.msra.mxu0 %v1440
      %1449 = vmatprep.subr.bf16.mxu0 0
      %1450 = vmatpush1.bf16.msra.mxu0 %v1441
      %1451 = vmatprep.subr.bf16.mxu0 0
      %1452 = vmatpush1.bf16.msra.mxu0 0
      %1453 = vmatprep.subr.bf16.mxu0 0
      %1454 = vmatpush1.bf16.msra.mxu0 0
      %1455 = vmatprep.subr.bf16.mxu0 0
      %1456 = vmatpush1.bf16.msra.mxu0 0
      %1457 = vmatprep.subr.bf16.mxu0 0
      %1458 = vmatpush1.bf16.msra.mxu0 0
      %1459 = vmatprep.subr.bf16.mxu0 0
      %1460 = vmatpush1.bf16.msra.mxu0 0
      %1461 = vmatprep.subr.bf16.mxu0 0
      %1462 = vmatpush1.bf16.msra.mxu0 0
      %1463 = vmatprep.subr.bf16.mxu0 0
      %1464 = vmatpush1.bf16.msra.mxu0 0
      %1465 = vmatprep.subr.bf16.mxu0 0
      %1466 = vmatpush1.bf16.msra.mxu0 0
      %1467 = vmatprep.subr.bf16.mxu0 0
      %1468 = vmatpush1.bf16.msra.mxu0 0
      %1469 = vmatprep.subr.bf16.mxu0 0
      %1470 = vmatpush1.bf16.msra.mxu0 0
      %1471 = vmatprep.subr.bf16.mxu0 0
      %1472 = vmatpush1.bf16.msra.mxu0 0
      %1473 = vmatprep.subr.bf16.mxu0 0
      %1474 = vmatpush1.bf16.msra.mxu0 0
      %1475 = vmatprep.subr.bf16.mxu0 0
      %1476 = vmatpush1.bf16.msra.mxu0 0
      %1477 = vmatprep.subr.bf16.mxu0 0
      %1478 = vmatpush1.bf16.msra.mxu0 0
      %1479 = vmatprep.mubr.bf16.mxu0 0
      %1480 = vmatmul.mubr.bf16.gmra.mrb[0].mxu0 %v1445
      %v1481 = vpop.f32.mrb[0].mxu0
      %v1482 = vadd.f32 %v1425, %v1481
      %v1483 = vpop.f32.mrb[0].mxu0
      %v1484 = vpop.f32.mrb[0].mxu0
      %v1485 = vadd.f32 %v1425, %v1484
      %v1486 = vpop.f32.mrb[0].mxu0
      %1487 = vdwg.mxu0
      %v1488 = vadd.f32 %v856, %v1482
      %v1489 = vadd.f32 %v857, %v1485
      %v1490 = vld [vmem:[%s769] sm:$0x1]
      %v1491 = vld [vmem:[%s772] sm:$0x1]
      %v1492 = vsel %vm888, %v1488, 0.0
      %1493 = vadd.xlane.f32.xlu0 %v1492
      %v1494 = vpop.xlane.xlu0 %1493
      %v1495 = vsel %vm888, %v1489, 0.0
      %1496 = vadd.xlane.f32.xlu0 %v1495
      %v1497 = vpop.xlane.xlu0 %1496
      %v1498 = vrcp.pop 32.0
      %v1499 = vmul.f32 %v1494, %v1498
      %v1500 = vmul.f32 %v1497, %v1498
      %v1501 = vsub.f32 %v1488, %v1499
      %v1502 = vsub.f32 %v1489, %v1500
      %v1503 = vmul.f32 %v1501, %v1501
      %v1504 = vmul.f32 %v1502, %v1502
      %v1505 = vsel %vm888, %v1503, 0.0
      %1506 = vadd.xlane.f32.xlu0 %v1505
      %v1507 = vpop.xlane.xlu0 %1506
      %v1508 = vsel %vm888, %v1504, 0.0
      %1509 = vadd.xlane.f32.xlu0 %v1508
      %v1510 = vpop.xlane.xlu0 %1509
      %v1511 = vmul.f32 %v1507, %v1498
      %v1512 = vmul.f32 %v1510, %v1498
      %v1513 = vadd.f32 %v1511, 1e-12
      %v1514 = vadd.f32 %v1512, 1e-12
      %v1515 = vrsqrt.pop %v1513
      %v1516 = vrsqrt.pop %v1514
      %v1517 = vmul.f32 %v1501, %v1515
      %v1518 = vmul.f32 %v1502, %v1516
      %v1520 = vlaneseq
      %v1521 = vshrl.u32 %v1520, 7
      %v1522 = vsub.s32 0, %v1521
      %v1523 = vrot.slane %v1490, %v1522
      %v1525 = vmul.f32 %v1517, %v1523
      %v1526 = vmul.f32 %v1518, %v1523
      %v1528 = vlaneseq
      %v1529 = vshrl.u32 %v1528, 7
      %v1530 = vsub.s32 0, %v1529
      %v1531 = vrot.slane %v1491, %v1530
      %v1533 = vadd.f32 %v1525, %v1531
      %v1534 = vadd.f32 %v1526, %v1531
      %v1535 = vpack.c.bf16 %v1533, %v1533
      %v1536 = vpack.c.bf16 %v1534, %v1534
      %v1537 = vld [vmem:[%s777] sm:$0xf]
      %v1538 = vld [vmem:[%s777 + $0x4] sm:$0xf]
      %v1539 = vld [vmem:[%s777 + $0x8] sm:$0xf]
      %v1540 = vld [vmem:[%s777 + $0xc] sm:$0xf]
      %v1541 = vld [vmem:[%s780] sm:$0x1]
      %v1543 = vlaneseq
      %v1544 = vshrl.u32 %v1543, 7
      %v1545 = vsub.s32 0, %v1544
      %v1546 = vrot.slane %v1541, %v1545
      %v1550 = vunpack.c.l.b16 %v1535
      %v1551 = vunpack.c.l.b16 %v1536
      %v1552 = vpack.c.b16 %v1551, %v1550
      %v1557 = vunpack.c.l.b16 %v1537
      %v1558 = vunpack.c.l.b16 %v1538
      %v1559 = vunpack.c.l.b16 %v1539
      %v1560 = vunpack.c.l.b16 %v1540
      %v1561 = vpack.c.b16 %v1558, %v1557
      %v1562 = vpack.c.b16 %v1560, %v1559
      %v1566 = vsel %vm888, %v1552, 0
      %1568 = vmatprep.subr.bf16.mxu0 0
      %1569 = vmatpush1.bf16.msra.mxu0 %v1561
      %1570 = vmatprep.subr.bf16.mxu0 0
      %1571 = vmatpush1.bf16.msra.mxu0 %v1562
      %1572 = vmatprep.subr.bf16.mxu0 0
      %1573 = vmatpush1.bf16.msra.mxu0 0
      %1574 = vmatprep.subr.bf16.mxu0 0
      %1575 = vmatpush1.bf16.msra.mxu0 0
      %1576 = vmatprep.subr.bf16.mxu0 0
      %1577 = vmatpush1.bf16.msra.mxu0 0
      %1578 = vmatprep.subr.bf16.mxu0 0
      %1579 = vmatpush1.bf16.msra.mxu0 0
      %1580 = vmatprep.subr.bf16.mxu0 0
      %1581 = vmatpush1.bf16.msra.mxu0 0
      %1582 = vmatprep.subr.bf16.mxu0 0
      %1583 = vmatpush1.bf16.msra.mxu0 0
      %1584 = vmatprep.subr.bf16.mxu0 0
      %1585 = vmatpush1.bf16.msra.mxu0 0
      %1586 = vmatprep.subr.bf16.mxu0 0
      %1587 = vmatpush1.bf16.msra.mxu0 0
      %1588 = vmatprep.subr.bf16.mxu0 0
      %1589 = vmatpush1.bf16.msra.mxu0 0
      %1590 = vmatprep.subr.bf16.mxu0 0
      %1591 = vmatpush1.bf16.msra.mxu0 0
      %1592 = vmatprep.subr.bf16.mxu0 0
      %1593 = vmatpush1.bf16.msra.mxu0 0
      %1594 = vmatprep.subr.bf16.mxu0 0
      %1595 = vmatpush1.bf16.msra.mxu0 0
      %1596 = vmatprep.subr.bf16.mxu0 0
      %1597 = vmatpush1.bf16.msra.mxu0 0
      %1598 = vmatprep.subr.bf16.mxu0 0
      %1599 = vmatpush1.bf16.msra.mxu0 0
      %1600 = vmatprep.mubr.bf16.mxu0 0
      %1601 = vmatmul.mubr.bf16.gmra.mrb[0].mxu0 %v1566
      %v1602 = vpop.f32.mrb[0].mxu0
      %v1603 = vadd.f32 %v1546, %v1602
      %v1604 = vpop.f32.mrb[0].mxu0
      %v1605 = vpop.f32.mrb[0].mxu0
      %v1606 = vadd.f32 %v1546, %v1605
      %v1607 = vpop.f32.mrb[0].mxu0
      %1608 = vdwg.mxu0
      %v1609 = vmul.f32 %v1603, 0.5
      %v1610 = vmul.f32 %v1606, 0.5
      %v1611 = vmul.f32 %v1603, 0.044715
      %v1612 = vmul.f32 %v1606, 0.044715
      %v1613 = vmul.f32 %v1611, %v1603
      %v1614 = vmul.f32 %v1612, %v1606
      %v1615 = vmul.f32 %v1613, %v1603
      %v1616 = vmul.f32 %v1614, %v1606
      %v1617 = vadd.f32 %v1603, %v1615
      %v1618 = vadd.f32 %v1606, %v1616
      %v1619 = vmul.f32 %v1617, 0.7978846
      %v1620 = vmul.f32 %v1618, 0.7978846
      %v1621 = vtanh.pop %v1619
      %v1622 = vtanh.pop %v1620
      %v1623 = vadd.f32 %v1621, 1.0
      %v1624 = vadd.f32 %v1622, 1.0
      %v1625 = vmul.f32 %v1609, %v1623
      %v1626 = vmul.f32 %v1610, %v1624
      %v1627 = vpack.c.bf16 %v1626, %v1625
      %v1628 = vld [vmem:[%s785] sm:$0xf]
      %v1629 = vld [vmem:[%s785 + $0x4] sm:$0xf]
      %v1630 = vld [vmem:[%s785 + $0x8] sm:$0xf]
      %v1631 = vld [vmem:[%s785 + $0xc] sm:$0xf]
      %v1632 = vld [vmem:[%s785 + $0x10] sm:$0xf]
      %v1633 = vld [vmem:[%s785 + $0x14] sm:$0xf]
      %v1634 = vld [vmem:[%s785 + $0x18] sm:$0xf]
      %v1635 = vld [vmem:[%s785 + $0x1c] sm:$0xf]
      %v1636 = vld [vmem:[%s788] sm:$0x1]
      %v1638 = vlaneseq
      %v1639 = vshrl.u32 %v1638, 7
      %v1640 = vsub.s32 0, %v1639
      %v1641 = vrot.slane %v1636, %v1640
      %v1651 = vunpack.c.l.b16 %v1628
      %v1652 = vunpack.c.l.b16 %v1629
      %v1653 = vunpack.c.l.b16 %v1630
      %v1654 = vunpack.c.l.b16 %v1631
      %v1655 = vunpack.c.l.b16 %v1632
      %v1656 = vunpack.c.l.b16 %v1633
      %v1657 = vunpack.c.l.b16 %v1634
      %v1658 = vunpack.c.l.b16 %v1635
      %v1659 = vpack.c.b16 %v1652, %v1651
      %v1660 = vpack.c.b16 %v1654, %v1653
      %v1661 = vpack.c.b16 %v1656, %v1655
      %v1662 = vpack.c.b16 %v1658, %v1657
      %vm1667 = vcmask 523264
      %v1669 = vsel %vm1667, %v1627, 0
      %1671 = vmatprep.subr.bf16.mxu0 0
      %1672 = vmatpush1.bf16.msra.mxu0 %v1659
      %1673 = vmatprep.subr.bf16.mxu0 0
      %1674 = vmatpush1.bf16.msra.mxu0 %v1660
      %1675 = vmatprep.subr.bf16.mxu0 0
      %1676 = vmatpush1.bf16.msra.mxu0 %v1661
      %1677 = vmatprep.subr.bf16.mxu0 0
      %1678 = vmatpush1.bf16.msra.mxu0 %v1662
      %1679 = vmatprep.subr.bf16.mxu0 0
      %1680 = vmatpush1.bf16.msra.mxu0 0
      %1681 = vmatprep.subr.bf16.mxu0 0
      %1682 = vmatpush1.bf16.msra.mxu0 0
      %1683 = vmatprep.subr.bf16.mxu0 0
      %1684 = vmatpush1.bf16.msra.mxu0 0
      %1685 = vmatprep.subr.bf16.mxu0 0
      %1686 = vmatpush1.bf16.msra.mxu0 0
      %1687 = vmatprep.subr.bf16.mxu0 0
      %1688 = vmatpush1.bf16.msra.mxu0 0
      %1689 = vmatprep.subr.bf16.mxu0 0
      %1690 = vmatpush1.bf16.msra.mxu0 0
      %1691 = vmatprep.subr.bf16.mxu0 0
      %1692 = vmatpush1.bf16.msra.mxu0 0
      %1693 = vmatprep.subr.bf16.mxu0 0
      %1694 = vmatpush1.bf16.msra.mxu0 0
      %1695 = vmatprep.subr.bf16.mxu0 0
      %1696 = vmatpush1.bf16.msra.mxu0 0
      %1697 = vmatprep.subr.bf16.mxu0 0
      %1698 = vmatpush1.bf16.msra.mxu0 0
      %1699 = vmatprep.subr.bf16.mxu0 0
      %1700 = vmatpush1.bf16.msra.mxu0 0
      %1701 = vmatprep.subr.bf16.mxu0 0
      %1702 = vmatpush1.bf16.msra.mxu0 0
      %1703 = vmatprep.mubr.bf16.mxu0 0
      %1704 = vmatmul.mubr.bf16.gmra.mrb[0].mxu0 %v1669
      %v1705 = vpop.f32.mrb[0].mxu0
      %v1706 = vadd.f32 %v1641, %v1705
      %v1707 = vpop.f32.mrb[0].mxu0
      %v1708 = vpop.f32.mrb[0].mxu0
      %v1709 = vadd.f32 %v1641, %v1708
      %v1710 = vpop.f32.mrb[0].mxu0
      %1711 = vdwg.mxu0
      %v1712 = vadd.f32 %v1533, %v1706
      %v1713 = vadd.f32 %v1534, %v1709
      %v1714 = vld [vmem:[%s791] sm:$0x1]
      %v1715 = vld [vmem:[%s794] sm:$0x1]
      %v1716 = vsel %vm888, %v1712, 0.0
      %1717 = vadd.xlane.f32.xlu0 %v1716
      %v1718 = vpop.xlane.xlu0 %1717
      %v1719 = vsel %vm888, %v1713, 0.0
      %1720 = vadd.xlane.f32.xlu0 %v1719
      %v1721 = vpop.xlane.xlu0 %1720
      %v1722 = vmul.f32 %v1718, %v1498
      %v1723 = vmul.f32 %v1721, %v1498
      %v1724 = vsub.f32 %v1712, %v1722
      %v1725 = vsub.f32 %v1713, %v1723
      %v1726 = vmul.f32 %v1724, %v1724
      %v1727 = vmul.f32 %v1725, %v1725
      %v1728 = vsel %vm888, %v1726, 0.0
      %1729 = vadd.xlane.f32.xlu0 %v1728
      %v1730 = vpop.xlane.xlu0 %1729
      %v1731 = vsel %vm888, %v1727, 0.0
      %1732 = vadd.xlane.f32.xlu0 %v1731
      %v1733 = vpop.xlane.xlu0 %1732
      %v1734 = vmul.f32 %v1730, %v1498
      %v1735 = vmul.f32 %v1733, %v1498
      %v1736 = vadd.f32 %v1734, 1e-12
      %v1737 = vadd.f32 %v1735, 1e-12
      %v1738 = vrsqrt.pop %v1736
      %v1739 = vrsqrt.pop %v1737
      %v1740 = vmul.f32 %v1724, %v1738
      %v1741 = vmul.f32 %v1725, %v1739
      %v1743 = vlaneseq
      %v1744 = vshrl.u32 %v1743, 7
      %v1745 = vsub.s32 0, %v1744
      %v1746 = vrot.slane %v1714, %v1745
      %v1748 = vmul.f32 %v1740, %v1746
      %v1749 = vmul.f32 %v1741, %v1746
      %v1751 = vlaneseq
      %v1752 = vshrl.u32 %v1751, 7
      %v1753 = vsub.s32 0, %v1752
      %v1754 = vrot.slane %v1715, %v1753
      %v1756 = vadd.f32 %v1748, %v1754
      %v1757 = vadd.f32 %v1749, %v1754
      %p1758 = scmp.lt.s32.totalorder %s34, 1
      // Predicated region
      $region97: #{discriminator_forward.1} parent=91 // pred_check
        %p1759 = pneg %p1758
      $region98: #{discriminator_forward.1} parent=91 // pred_check_branch
        %1761 = sbr.rel (%p1759) target = $region100
      $region99: #{discriminator_forward.1} parent=91 // pred_region
        %1762 = vst.msk [vmem:[#allocation2] sm:$0xff] %vm888, %v1756
        %1763 = vst.msk [vmem:[#allocation2 + $0x8] sm:$0xff] %vm888, %v1757
      $region100: #{discriminator_forward.1} parent=91 // pred_fallthru
        _
      %p1764 = scmp.eq.s32.totalorder %s34, 1
      // Predicated region
      $region101: #{discriminator_forward.1} parent=91 // pred_check
        %p1765 = pneg %p1764
      $region102: #{discriminator_forward.1} parent=91 // pred_check_branch
        %1767 = sbr.rel (%p1765) target = $region104
      $region103: #{discriminator_forward.1} parent=91 // pred_region
        %v1768 = vpack.c.bf16 %v1756, %v1756
        %v1769 = vpack.c.bf16 %v1757, %v1757
        %v1770 = vld [vmem:[%s16] sm:$0xf]
        %v1771 = vld [vmem:[%s16 + $0x4] sm:$0xf]
        %v1772 = vld [vmem:[%s16 + $0x8] sm:$0xf]
        %v1773 = vld [vmem:[%s16 + $0xc] sm:$0xf]
        %v1774 = vld [vmem:[%s17] sm:$0x1]
        %v1776 = vlaneseq
        %v1777 = vshrl.u32 %v1776, 7
        %v1778 = vsub.s32 0, %v1777
        %v1779 = vrot.slane %v1774, %v1778
        %v1783 = vunpack.c.l.b16 %v1768
        %v1784 = vunpack.c.l.b16 %v1769
        %v1785 = vrot.slane %v1784, 7
        %vm1786 = vcmask 1041409
        %v1787 = vsel %vm1786, %v1785, %v1783
        %v1788 = vpack.c.b16 %v1787, %v1787
        %v1793 = vunpack.c.l.b16 %v1770
        %v1794 = vunpack.c.l.b16 %v1771
        %v1795 = vunpack.c.l.b16 %v1772
        %v1796 = vunpack.c.l.b16 %v1773
        %v1797 = vpack.c.b16 %v1794, %v1793
        %v1798 = vpack.c.b16 %v1796, %v1795
        %v1802 = vsel %vm888, %v1788, 0
        %1804 = vmatprep.subr.bf16.mxu0 0
        %1805 = vmatpush1.bf16.msra.mxu0 %v1797
        %1806 = vmatprep.subr.bf16.mxu0 0
        %1807 = vmatpush1.bf16.msra.mxu0 %v1798
        %1808 = vmatprep.subr.bf16.mxu0 0
        %1809 = vmatpush1.bf16.msra.mxu0 0
        %1810 = vmatprep.subr.bf16.mxu0 0
        %1811 = vmatpush1.bf16.msra.mxu0 0
        %1812 = vmatprep.subr.bf16.mxu0 0
        %1813 = vmatpush1.bf16.msra.mxu0 0
        %1814 = vmatprep.subr.bf16.mxu0 0
        %1815 = vmatpush1.bf16.msra.mxu0 0
        %1816 = vmatprep.subr.bf16.mxu0 0
        %1817 = vmatpush1.bf16.msra.mxu0 0
        %1818 = vmatprep.subr.bf16.mxu0 0
        %1819 = vmatpush1.bf16.msra.mxu0 0
        %1820 = vmatprep.subr.bf16.mxu0 0
        %1821 = vmatpush1.bf16.msra.mxu0 0
        %1822 = vmatprep.subr.bf16.mxu0 0
        %1823 = vmatpush1.bf16.msra.mxu0 0
        %1824 = vmatprep.subr.bf16.mxu0 0
        %1825 = vmatpush1.bf16.msra.mxu0 0
        %1826 = vmatprep.subr.bf16.mxu0 0
        %1827 = vmatpush1.bf16.msra.mxu0 0
        %1828 = vmatprep.subr.bf16.mxu0 0
        %1829 = vmatpush1.bf16.msra.mxu0 0
        %1830 = vmatprep.subr.bf16.mxu0 0
        %1831 = vmatpush1.bf16.msra.mxu0 0
        %1832 = vmatprep.subr.bf16.mxu0 0
        %1833 = vmatpush1.bf16.msra.mxu0 0
        %1834 = vmatprep.subr.bf16.mxu0 0
        %1835 = vmatpush1.bf16.msra.mxu0 0
        %1836 = vmatprep.mubr.bf16.mxu0 0
        %1837 = vmatmul.mubr.bf16.gmra.mrb[0].mxu0 %v1802
        %v1838 = vpop.f32.mrb[0].mxu0
        %v1839 = vadd.f32 %v1779, %v1838
        %v1840 = vpop.f32.mrb[0].mxu0
        %v1841 = vpop.f32.mrb[0].mxu0
        %v1842 = vpop.f32.mrb[0].mxu0
        %1843 = vdwg.mxu0
        %v1844 = vsub.f32 0.0, %v1839
        %v1845 = vmul.f32 %v1844, 1.442695
        %v1846 = vpow.pop %v1845
        %v1847 = vadd.f32 %v1846, 1.0
        %v1848 = vrcp.pop %v1847
        %v1849 = vmul.f32 1.0, %v1848
        %1850 = vst [vmem:[%s798] sm:$0x3] %v1849
      $region104: #{discriminator_forward.1} parent=91 // pred_fallthru
        _
      %p1851 = scmp.lt.s32.totalorder %s33, 0
      %s1852 = scalar_select %p1851, %s33, 0
      %s1853 = smul.addr %s1852, 2
      %s1854 = scalar_lea.vmem %s18, %s1853
      // Predicated region
      $region105: #{discriminator_forward.1} parent=91 // pred_check
        %p1855 = pneg %p507
      $region106: #{discriminator_forward.1} parent=91 // pred_check_branch
        %1857 = sbr.rel (%p1855) target = $region108
      $region107: #{discriminator_forward.1} parent=91 // pred_region
        _
      $region108: #{discriminator_forward.1} parent=91 // pred_fallthru
        _
      // Predicated region
      $region109: #{discriminator_forward.1} parent=91 // pred_check
        %p1858 = pneg %p507
      $region110: #{discriminator_forward.1} parent=91 // pred_check_branch
        %1860 = sbr.rel (%p1858) target = $region112
      $region111: #{discriminator_forward.1} parent=91 // pred_region
        %p1861 = scmp.lt.s32.totalorder %s33, 0
        %s1862 = scalar_select %p1861, %s33, 0
        %s1863 = smul.addr %s1862, 2
        %s1864 = scalar_lea.vmem %s18, %s1863
      $region112: #{discriminator_forward.1} parent=91 // pred_fallthru
        _
    $region92: #{discriminator_forward.1} parent=5 // pred_fallthru
      _
    %p1865 = scmp.le.s32.totalorder 2, %s24
    // Predicated region
    $region113: #{discriminator_forward.1} parent=5 // pred_check
      %p1866 = pneg %p1865
    $region114: #{discriminator_forward.1} parent=5 // pred_check_branch
      %1868 = sbr.rel (%p1866) target = $region116
    $region115: #{discriminator_forward.1} parent=5 // pred_region
      %s1869 = ssub.s32 %s24, 2
    $region116: #{discriminator_forward.1} parent=5 // pred_fallthru
      _
  $region6: #{discriminator_forward.1} parent=0 // loop_footer
    %s28 = sadd.s32 1, %s24
  $region7: #{discriminator_forward.1} parent=0 // loop_footer_branch
    %23 = sbr.rel target = $region3
  $region8: #{discriminator_forward.1} parent=0 // loop_exit
    _

</llo_original>
